<compile_context>
chip_gen: v7x
topology: tpu7x:2x2x1
jax: 0.10.0
libtpu: 0.0.40
codegen_flags: <defaults>
</compile_context>

<pallas_src>
import functools

import jax
import jax.numpy as jnp
from jax.experimental import pallas as pl
from jax.experimental.pallas import tpu as pltpu


def _round_up(x, m):
    return ((x + m - 1) // m) * m


def _project_in_kernel(x_ref,
                       w0_ref, b0_ref,
                       r0_w3_ref, r0_b3_ref, r0_w1_ref, r0_b1_ref,
                       r1_w3_ref, r1_b3_ref, r1_w1_ref, r1_b1_ref,
                       wh_ref, bh_ref,
                       wo_ref, bo_ref,
                       o_ref,
                       *, tile_rows, halo, seq_len):
    f32 = jnp.float32
    bf16 = jnp.bfloat16
    rows = tile_rows + 2 * halo

    x = x_ref[0, 0]                                       # (rows, D) bf16

    # Conv1d(dim, dim, 1)
    h = jnp.dot(x, w0_ref[...], preferred_element_type=f32) + b0_ref[...]

    # Global row index of every buffer row; rows outside [0, seq_len) are halo /
    # pad rows and must not leak into the k=3 conv (Conv1d zero padding).
    tile = pl.program_id(1)
    local = jax.lax.broadcasted_iota(jnp.int32, (rows, 1), 0)
    g = tile * tile_rows - halo + local
    in_seq = jnp.logical_and(g >= 0, g < seq_len)          # (rows, 1) bool

    def res_block(h, w3_ref, b3_ref, w1_ref, b1_ref):
        # ResConv1DBlock(norm=None, act=relu): h + conv1x1(relu(conv3(relu(h))))
        a = jnp.where(in_seq, jnp.maximum(h, 0.0), 0.0)    # f32, masked
        # t-1 / t+1 neighbours via XLU rotations; wrap rows only affect halo
        # rows that are discarded before the output store.
        a_prev = pltpu.roll(a, 1, 0)
        a_next = pltpu.roll(a, rows - 1, 0)
        y = (jnp.dot(a_prev.astype(bf16), w3_ref[0], preferred_element_type=f32)
             + jnp.dot(a.astype(bf16),      w3_ref[1], preferred_element_type=f32)
             + jnp.dot(a_next.astype(bf16), w3_ref[2], preferred_element_type=f32)
             + b3_ref[...])
        b = jnp.maximum(y, 0.0).astype(bf16)
        c = jnp.dot(b, w1_ref[...], preferred_element_type=f32) + b1_ref[...]
        return h + c

    h = res_block(h, r0_w3_ref, r0_b3_ref, r0_w1_ref, r0_b1_ref)
    h = res_block(h, r1_w3_ref, r1_b3_ref, r1_w1_ref, r1_b1_ref)

    # Drop the halo rows before the channel-reducing tail (halo=8 keeps the
    # slice sublane-aligned).
    h = h[halo:halo + tile_rows]

    # Conv1d(dim, dim//2, 1) -> ReLU      (columns lane-padded in the wrapper)
    h2 = jnp.maximum(
        jnp.dot(h.astype(bf16), wh_ref[...], preferred_element_type=f32)
        + bh_ref[...], 0.0)
    # Conv1d(dim//2, codebook_dim, 1)     (columns lane-padded in the wrapper)
    out = (jnp.dot(h2.astype(bf16), wo_ref[...], preferred_element_type=f32)
           + bo_ref[...])

    o_ref[0, 0] = out.astype(o_ref.dtype)


def project_in_pallas(z, params, codebook_dim, *, row_tile=512):
    """z: (B, T, dim) channels-last.  Returns (B, T, codebook_dim)."""
    B, T, D = z.shape
    half = params["wh"].shape[1]

    HALO = 8                                   # >= 2 required; 8 keeps alignment
    TT = min(_round_up(row_tile, 8), _round_up(T, 8))
    n_tiles = pl.cdiv(T, TT)
    Tp = n_tiles * TT
    ROWS = TT + 2 * HALO

    half_p = max(128, _round_up(half, 128))            # lane-dense hidden width
    cd_p = max(128, _round_up(codebook_dim, 128))      # lane-dense output width

    bf16, f32 = jnp.bfloat16, jnp.float32

    # --- activations: bf16, zero-pad T, build overlapping halo row-windows.
    x = z.astype(bf16)
    x = jnp.pad(x, ((0, 0), (HALO, HALO + Tp - T), (0, 0)))
    windows = jnp.stack(
        [x[:, n * TT: n * TT + ROWS, :] for n in range(n_tiles)], axis=1)
    # windows: (B, n_tiles, ROWS, D)

    # --- weights: bf16 matmul operands, f32 biases, lane-padded tail.
    def pad_cols(a, width):
        return jnp.pad(a, ((0, 0), (0, width - a.shape[1])))

    wh = pad_cols(params["wh"], half_p).astype(bf16)
    bh = pad_cols(params["bh"], half_p).astype(f32)
    wo = jnp.pad(params["wo"],
                 ((0, half_p - half), (0, cd_p - codebook_dim))).astype(bf16)
    bo = pad_cols(params["bo"], cd_p).astype(f32)

    weight_args = [
        params["w0"].astype(bf16), params["b0"].astype(f32),
        params["r0_w3"].astype(bf16), params["r0_b3"].astype(f32),
        params["r0_w1"].astype(bf16), params["r0_b1"].astype(f32),
        params["r1_w3"].astype(bf16), params["r1_b3"].astype(f32),
        params["r1_w1"].astype(bf16), params["r1_b1"].astype(f32),
        wh, bh, wo, bo,
    ]

    def const_spec(a):
        nd = a.ndim
        return pl.BlockSpec(a.shape, lambda b, n, _nd=nd: (0,) * _nd)

    in_specs = [pl.BlockSpec((1, 1, ROWS, D), lambda b, n: (b, n, 0, 0))]
    in_specs += [const_spec(a) for a in weight_args]
    out_specs = pl.BlockSpec((1, 1, TT, cd_p), lambda b, n: (b, n, 0, 0))

    flops = 2 * B * Tp * (9 * D * D + D * half_p + half_p * cd_p)
    bytes_accessed = (windows.size * windows.dtype.itemsize
                      + sum(a.size * a.dtype.itemsize for a in weight_args)
                      + B * Tp * cd_p * 4)

    kernel = functools.partial(_project_in_kernel,
                               tile_rows=TT, halo=HALO, seq_len=T)

    out = pl.pallas_call(
        kernel,
        out_shape=jax.ShapeDtypeStruct((B, n_tiles, TT, cd_p), z.dtype),
        grid_spec=pltpu.PrefetchScalarGridSpec(
            num_scalar_prefetch=0,
            grid=(B, n_tiles),
            in_specs=in_specs,
            out_specs=out_specs,
        ),
        compiler_params=pltpu.CompilerParams(
            dimension_semantics=("parallel", "parallel"),
            vmem_limit_bytes=64 * 1024 * 1024,
        ),
        cost_estimate=pl.CostEstimate(
            flops=int(flops), transcendentals=0,
            bytes_accessed=int(bytes_accessed)),
    )(windows, *weight_args)

    out = out.reshape(B, Tp, cd_p)
    return out[:, :T, :codebook_dim]


def init_params(key, dim, codebook_dim, dtype=jnp.float32):
    """Deterministic synthetic params (same shapes as the PyTorch module),
    stored as (in, out) matmul layout for the kernel."""
    ks = jax.random.split(key, 16)
    s = 0.05

    def w(k, shape):
        return (s * jax.random.normal(k, shape)).astype(dtype)

    half = dim // 2
    return {
        "w0":    w(ks[0], (dim, dim)),
        "b0":    w(ks[1], (1, dim)),
        # resblock 0: conv3 weights indexed as (tap k in {t-1,t,t+1}, in, out)
        "r0_w3": w(ks[2], (3, dim, dim)),
        "r0_b3": w(ks[3], (1, dim)),
        "r0_w1": w(ks[4], (dim, dim)),
        "r0_b1": w(ks[5], (1, dim)),
        # resblock 1
        "r1_w3": w(ks[6], (3, dim, dim)),
        "r1_b3": w(ks[7], (1, dim)),
        "r1_w1": w(ks[8], (dim, dim)),
        "r1_b1": w(ks[9], (1, dim)),
        # Conv1d(dim, dim//2, 1)
        "wh":    w(ks[10], (dim, half)),
        "bh":    w(ks[11], (1, half)),
        # Conv1d(dim//2, codebook_dim, 1)
        "wo":    w(ks[12], (half, codebook_dim)),
        "bo":    w(ks[13], (1, codebook_dim)),
    }


def project_in_reference(z, params):
    """Pure-JAX reference (f32 activations; weights quantized to bf16 and back
    to match the kernel's bf16 weight storage)."""
    def q(w):
        return w.astype(jnp.bfloat16).astype(jnp.float32)

    def conv1x1(x, w, b):
        return jnp.einsum("btd,de->bte", x, q(w)) + b

    def conv3(x, w3, b3):
        zero = jnp.zeros_like(x[:, :1])
        x_prev = jnp.concatenate([zero, x[:, :-1]], axis=1)
        x_next = jnp.concatenate([x[:, 1:], zero], axis=1)
        w3q = q(w3)
        return (jnp.einsum("btd,de->bte", x_prev, w3q[0])
                + jnp.einsum("btd,de->bte", x, w3q[1])
                + jnp.einsum("btd,de->bte", x_next, w3q[2])) + b3

    h = conv1x1(z, params["w0"], params["b0"])
    for p in ("r0", "r1"):
        a = jax.nn.relu(h)
        y = conv3(a, params[f"{p}_w3"], params[f"{p}_b3"])
        c = conv1x1(jax.nn.relu(y), params[f"{p}_w1"], params[f"{p}_b1"])
        h = h + c
    h2 = jax.nn.relu(conv1x1(h, params["wh"], params["bh"]))
    return conv1x1(h2, params["wo"], params["bo"])


if __name__ == "__main__":
    B, T, dim, codebook_dim = 2, 16, 32, 8

    key = jax.random.PRNGKey(0)
    k_x, k_p = jax.random.split(key)
    z = jax.random.normal(k_x, (B, T, dim), dtype=jnp.float32)
    params = init_params(k_p, dim, codebook_dim)

    ref = project_in_reference(z, params)

    # 1) default tiling (single row-tile for this small T)
    out = project_in_pallas(z, params, codebook_dim)
    out = jax.block_until_ready(out)
    assert out.shape == (B, T, codebook_dim)
    assert jnp.allclose(out, ref, atol=1e-2, rtol=1e-2), (
        f"mismatch vs reference (max abs err {jnp.max(jnp.abs(out - ref))})")

    # 2) force multiple row-tiles to exercise the halo / boundary-mask path
    out2 = project_in_pallas(z, params, codebook_dim, row_tile=8)
    out2 = jax.block_until_ready(out2)
    assert jnp.allclose(out2, ref, atol=1e-2, rtol=1e-2), (
        f"tiled mismatch vs reference (max abs err {jnp.max(jnp.abs(out2 - ref))})")

    print("KERNEL_OK")
</pallas_src>

<mosaic_0001>
module attributes {stable_mosaic.version = 11 : i64} {
  func.func @_project_in_kernel(%arg0: i32, %arg1: i32, %arg2: memref<1x1x32x32xbf16, #tpu.memory_space<vmem>>, %arg3: memref<32x32xbf16, #tpu.memory_space<vmem>>, %arg4: memref<1x32xf32, #tpu.memory_space<vmem>>, %arg5: memref<3x32x32xbf16, #tpu.memory_space<vmem>>, %arg6: memref<1x32xf32, #tpu.memory_space<vmem>>, %arg7: memref<32x32xbf16, #tpu.memory_space<vmem>>, %arg8: memref<1x32xf32, #tpu.memory_space<vmem>>, %arg9: memref<3x32x32xbf16, #tpu.memory_space<vmem>>, %arg10: memref<1x32xf32, #tpu.memory_space<vmem>>, %arg11: memref<32x32xbf16, #tpu.memory_space<vmem>>, %arg12: memref<1x32xf32, #tpu.memory_space<vmem>>, %arg13: memref<32x128xbf16, #tpu.memory_space<vmem>>, %arg14: memref<1x128xf32, #tpu.memory_space<vmem>>, %arg15: memref<128x128xbf16, #tpu.memory_space<vmem>>, %arg16: memref<1x128xf32, #tpu.memory_space<vmem>>, %arg17: memref<1x1x16x128xf32, #tpu.memory_space<vmem>>) attributes {dimension_semantics = [#tpu.dimension_semantics<parallel>, #tpu.dimension_semantics<parallel>], iteration_bounds = array<i64: 2, 1>, scalar_prefetch = 0 : i64, scratch_operands = 0 : i64, tpu.core_type = #tpu.core_type<tc>, window_params = [{transform_indices = @transform_0, window_bounds = array<i64: 1, 1, 32, 32>}, {pipeline_mode = #tpu.pipeline_mode<synchronous>, transform_indices = @transform_1, window_bounds = array<i64: 32, 32>}, {pipeline_mode = #tpu.pipeline_mode<synchronous>, transform_indices = @transform_2, window_bounds = array<i64: 1, 32>}, {pipeline_mode = #tpu.pipeline_mode<synchronous>, transform_indices = @transform_3, window_bounds = array<i64: 3, 32, 32>}, {pipeline_mode = #tpu.pipeline_mode<synchronous>, transform_indices = @transform_4, window_bounds = array<i64: 1, 32>}, {pipeline_mode = #tpu.pipeline_mode<synchronous>, transform_indices = @transform_5, window_bounds = array<i64: 32, 32>}, {pipeline_mode = #tpu.pipeline_mode<synchronous>, transform_indices = @transform_6, window_bounds = array<i64: 1, 32>}, {pipeline_mode = #tpu.pipeline_mode<synchronous>, transform_indices = @transform_7, window_bounds = array<i64: 3, 32, 32>}, {pipeline_mode = #tpu.pipeline_mode<synchronous>, transform_indices = @transform_8, window_bounds = array<i64: 1, 32>}, {pipeline_mode = #tpu.pipeline_mode<synchronous>, transform_indices = @transform_9, window_bounds = array<i64: 32, 32>}, {pipeline_mode = #tpu.pipeline_mode<synchronous>, transform_indices = @transform_10, window_bounds = array<i64: 1, 32>}, {pipeline_mode = #tpu.pipeline_mode<synchronous>, transform_indices = @transform_11, window_bounds = array<i64: 32, 128>}, {pipeline_mode = #tpu.pipeline_mode<synchronous>, transform_indices = @transform_12, window_bounds = array<i64: 1, 128>}, {pipeline_mode = #tpu.pipeline_mode<synchronous>, transform_indices = @transform_13, window_bounds = array<i64: 128, 128>}, {pipeline_mode = #tpu.pipeline_mode<synchronous>, transform_indices = @transform_14, window_bounds = array<i64: 1, 128>}, {transform_indices = @transform_15, window_bounds = array<i64: 1, 1, 16, 128>}]} {
    %c0 = arith.constant 0 : index
    %c0_0 = arith.constant 0 : index
    %c0_1 = arith.constant 0 : index
    %c0_2 = arith.constant 0 : index
    %0 = vector.load %arg2[%c0, %c0_0, %c0_1, %c0_2] : memref<1x1x32x32xbf16, #tpu.memory_space<vmem>>, vector<1x1x32x32xbf16>
    %1 = vector.shape_cast %0 : vector<1x1x32x32xbf16> to vector<32x32xbf16>
    %c0_3 = arith.constant 0 : index
    %c0_4 = arith.constant 0 : index
    %2 = vector.load %arg3[%c0_3, %c0_4] : memref<32x32xbf16, #tpu.memory_space<vmem>>, vector<32x32xbf16>
    %cst = arith.constant dense<0.000000e+00> : vector<32x32xf32>
    %3 = tpu.matmul %1, %2, %cst {dimension_numbers = #tpu.dot_dimension_numbers<[1], [0], [0], [1], [0, 0, 1, 1], [], []>} : vector<32x32xbf16>, vector<32x32xbf16>, vector<32x32xf32> -> vector<32x32xf32>
    %c0_5 = arith.constant 0 : index
    %c0_6 = arith.constant 0 : index
    %4 = vector.load %arg4[%c0_5, %c0_6] : memref<1x32xf32, #tpu.memory_space<vmem>>, vector<1x32xf32>
    %5 = vector.broadcast %4 : vector<1x32xf32> to vector<32x32xf32>
    %6 = arith.addf %3, %5 : vector<32x32xf32>
    %7 = tpu.iota {dimensions = array<i32: 0>} : vector<32x1xi32>
    %c16_i32 = arith.constant 16 : i32
    %8 = arith.muli %arg1, %c16_i32 : i32
    %c8_i32 = arith.constant 8 : i32
    %9 = arith.subi %8, %c8_i32 : i32
    %10 = vector.broadcast %9 : i32 to vector<32x1xi32>
    %11 = arith.addi %10, %7 : vector<32x1xi32>
    %c0_i32 = arith.constant 0 : i32
    %12 = vector.broadcast %c0_i32 : i32 to vector<32x1xi32>
    %13 = arith.cmpi sge, %11, %12 : vector<32x1xi32>
    %c16_i32_7 = arith.constant 16 : i32
    %14 = vector.broadcast %c16_i32_7 : i32 to vector<32x1xi32>
    %15 = arith.cmpi slt, %11, %14 : vector<32x1xi32>
    %16 = arith.andi %13, %15 : vector<32x1xi1>
    %cst_8 = arith.constant 0.000000e+00 : f32
    %17 = vector.broadcast %cst_8 : f32 to vector<32x32xf32>
    %18 = arith.maximumf %6, %17 : vector<32x32xf32>
    %cst_9 = arith.constant 0.000000e+00 : f32
    %19 = vector.shape_cast %16 : vector<32x1xi1> to vector<32x1xi1>
    %20 = vector.broadcast %19 : vector<32x1xi1> to vector<32x32xi1>
    %21 = vector.broadcast %cst_9 : f32 to vector<32x32xf32>
    %22 = arith.select %20, %18, %21 : vector<32x32xi1>, vector<32x32xf32>
    %c1_i32 = arith.constant 1 : i32
    %23 = tpu.dynamic_rotate %22 by %c1_i32 dim 0 : vector<32x32xf32>, i32 -> vector<32x32xf32>
    %c31_i32 = arith.constant 31 : i32
    %24 = tpu.dynamic_rotate %22 by %c31_i32 dim 0 : vector<32x32xf32>, i32 -> vector<32x32xf32>
    %25 = arith.truncf %23 : vector<32x32xf32> to vector<32x32xbf16>
    %c0_10 = arith.constant 0 : index
    %c0_11 = arith.constant 0 : index
    %c0_12 = arith.constant 0 : index
    %26 = vector.load %arg5[%c0_10, %c0_11, %c0_12] : memref<3x32x32xbf16, #tpu.memory_space<vmem>>, vector<1x32x32xbf16>
    %27 = vector.shape_cast %26 : vector<1x32x32xbf16> to vector<32x32xbf16>
    %cst_13 = arith.constant dense<0.000000e+00> : vector<32x32xf32>
    %28 = tpu.matmul %25, %27, %cst_13 {dimension_numbers = #tpu.dot_dimension_numbers<[1], [0], [0], [1], [0, 0, 1, 1], [], []>} : vector<32x32xbf16>, vector<32x32xbf16>, vector<32x32xf32> -> vector<32x32xf32>
    %29 = arith.truncf %22 : vector<32x32xf32> to vector<32x32xbf16>
    %c1 = arith.constant 1 : index
    %c0_14 = arith.constant 0 : index
    %c0_15 = arith.constant 0 : index
    %30 = vector.load %arg5[%c1, %c0_14, %c0_15] : memref<3x32x32xbf16, #tpu.memory_space<vmem>>, vector<1x32x32xbf16>
    %31 = vector.shape_cast %30 : vector<1x32x32xbf16> to vector<32x32xbf16>
    %cst_16 = arith.constant dense<0.000000e+00> : vector<32x32xf32>
    %32 = tpu.matmul %29, %31, %cst_16 {dimension_numbers = #tpu.dot_dimension_numbers<[1], [0], [0], [1], [0, 0, 1, 1], [], []>} : vector<32x32xbf16>, vector<32x32xbf16>, vector<32x32xf32> -> vector<32x32xf32>
    %33 = arith.addf %28, %32 : vector<32x32xf32>
    %34 = arith.truncf %24 : vector<32x32xf32> to vector<32x32xbf16>
    %c2 = arith.constant 2 : index
    %c0_17 = arith.constant 0 : index
    %c0_18 = arith.constant 0 : index
    %35 = vector.load %arg5[%c2, %c0_17, %c0_18] : memref<3x32x32xbf16, #tpu.memory_space<vmem>>, vector<1x32x32xbf16>
    %36 = vector.shape_cast %35 : vector<1x32x32xbf16> to vector<32x32xbf16>
    %cst_19 = arith.constant dense<0.000000e+00> : vector<32x32xf32>
    %37 = tpu.matmul %34, %36, %cst_19 {dimension_numbers = #tpu.dot_dimension_numbers<[1], [0], [0], [1], [0, 0, 1, 1], [], []>} : vector<32x32xbf16>, vector<32x32xbf16>, vector<32x32xf32> -> vector<32x32xf32>
    %38 = arith.addf %33, %37 : vector<32x32xf32>
    %c0_20 = arith.constant 0 : index
    %c0_21 = arith.constant 0 : index
    %39 = vector.load %arg6[%c0_20, %c0_21] : memref<1x32xf32, #tpu.memory_space<vmem>>, vector<1x32xf32>
    %40 = vector.broadcast %39 : vector<1x32xf32> to vector<32x32xf32>
    %41 = arith.addf %38, %40 : vector<32x32xf32>
    %cst_22 = arith.constant 0.000000e+00 : f32
    %42 = vector.broadcast %cst_22 : f32 to vector<32x32xf32>
    %43 = arith.maximumf %41, %42 : vector<32x32xf32>
    %44 = arith.truncf %43 : vector<32x32xf32> to vector<32x32xbf16>
    %c0_23 = arith.constant 0 : index
    %c0_24 = arith.constant 0 : index
    %45 = vector.load %arg7[%c0_23, %c0_24] : memref<32x32xbf16, #tpu.memory_space<vmem>>, vector<32x32xbf16>
    %cst_25 = arith.constant dense<0.000000e+00> : vector<32x32xf32>
    %46 = tpu.matmul %44, %45, %cst_25 {dimension_numbers = #tpu.dot_dimension_numbers<[1], [0], [0], [1], [0, 0, 1, 1], [], []>} : vector<32x32xbf16>, vector<32x32xbf16>, vector<32x32xf32> -> vector<32x32xf32>
    %c0_26 = arith.constant 0 : index
    %c0_27 = arith.constant 0 : index
    %47 = vector.load %arg8[%c0_26, %c0_27] : memref<1x32xf32, #tpu.memory_space<vmem>>, vector<1x32xf32>
    %48 = vector.broadcast %47 : vector<1x32xf32> to vector<32x32xf32>
    %49 = arith.addf %46, %48 : vector<32x32xf32>
    %50 = arith.addf %6, %49 : vector<32x32xf32>
    %cst_28 = arith.constant 0.000000e+00 : f32
    %51 = vector.broadcast %cst_28 : f32 to vector<32x32xf32>
    %52 = arith.maximumf %50, %51 : vector<32x32xf32>
    %cst_29 = arith.constant 0.000000e+00 : f32
    %53 = vector.shape_cast %16 : vector<32x1xi1> to vector<32x1xi1>
    %54 = vector.broadcast %53 : vector<32x1xi1> to vector<32x32xi1>
    %55 = vector.broadcast %cst_29 : f32 to vector<32x32xf32>
    %56 = arith.select %54, %52, %55 : vector<32x32xi1>, vector<32x32xf32>
    %c1_i32_30 = arith.constant 1 : i32
    %57 = tpu.dynamic_rotate %56 by %c1_i32_30 dim 0 : vector<32x32xf32>, i32 -> vector<32x32xf32>
    %c31_i32_31 = arith.constant 31 : i32
    %58 = tpu.dynamic_rotate %56 by %c31_i32_31 dim 0 : vector<32x32xf32>, i32 -> vector<32x32xf32>
    %59 = arith.truncf %57 : vector<32x32xf32> to vector<32x32xbf16>
    %c0_32 = arith.constant 0 : index
    %c0_33 = arith.constant 0 : index
    %c0_34 = arith.constant 0 : index
    %60 = vector.load %arg9[%c0_32, %c0_33, %c0_34] : memref<3x32x32xbf16, #tpu.memory_space<vmem>>, vector<1x32x32xbf16>
    %61 = vector.shape_cast %60 : vector<1x32x32xbf16> to vector<32x32xbf16>
    %cst_35 = arith.constant dense<0.000000e+00> : vector<32x32xf32>
    %62 = tpu.matmul %59, %61, %cst_35 {dimension_numbers = #tpu.dot_dimension_numbers<[1], [0], [0], [1], [0, 0, 1, 1], [], []>} : vector<32x32xbf16>, vector<32x32xbf16>, vector<32x32xf32> -> vector<32x32xf32>
    %63 = arith.truncf %56 : vector<32x32xf32> to vector<32x32xbf16>
    %c1_36 = arith.constant 1 : index
    %c0_37 = arith.constant 0 : index
    %c0_38 = arith.constant 0 : index
    %64 = vector.load %arg9[%c1_36, %c0_37, %c0_38] : memref<3x32x32xbf16, #tpu.memory_space<vmem>>, vector<1x32x32xbf16>
    %65 = vector.shape_cast %64 : vector<1x32x32xbf16> to vector<32x32xbf16>
    %cst_39 = arith.constant dense<0.000000e+00> : vector<32x32xf32>
    %66 = tpu.matmul %63, %65, %cst_39 {dimension_numbers = #tpu.dot_dimension_numbers<[1], [0], [0], [1], [0, 0, 1, 1], [], []>} : vector<32x32xbf16>, vector<32x32xbf16>, vector<32x32xf32> -> vector<32x32xf32>
    %67 = arith.addf %62, %66 : vector<32x32xf32>
    %68 = arith.truncf %58 : vector<32x32xf32> to vector<32x32xbf16>
    %c2_40 = arith.constant 2 : index
    %c0_41 = arith.constant 0 : index
    %c0_42 = arith.constant 0 : index
    %69 = vector.load %arg9[%c2_40, %c0_41, %c0_42] : memref<3x32x32xbf16, #tpu.memory_space<vmem>>, vector<1x32x32xbf16>
    %70 = vector.shape_cast %69 : vector<1x32x32xbf16> to vector<32x32xbf16>
    %cst_43 = arith.constant dense<0.000000e+00> : vector<32x32xf32>
    %71 = tpu.matmul %68, %70, %cst_43 {dimension_numbers = #tpu.dot_dimension_numbers<[1], [0], [0], [1], [0, 0, 1, 1], [], []>} : vector<32x32xbf16>, vector<32x32xbf16>, vector<32x32xf32> -> vector<32x32xf32>
    %72 = arith.addf %67, %71 : vector<32x32xf32>
    %c0_44 = arith.constant 0 : index
    %c0_45 = arith.constant 0 : index
    %73 = vector.load %arg10[%c0_44, %c0_45] : memref<1x32xf32, #tpu.memory_space<vmem>>, vector<1x32xf32>
    %74 = vector.broadcast %73 : vector<1x32xf32> to vector<32x32xf32>
    %75 = arith.addf %72, %74 : vector<32x32xf32>
    %cst_46 = arith.constant 0.000000e+00 : f32
    %76 = vector.broadcast %cst_46 : f32 to vector<32x32xf32>
    %77 = arith.maximumf %75, %76 : vector<32x32xf32>
    %78 = arith.truncf %77 : vector<32x32xf32> to vector<32x32xbf16>
    %c0_47 = arith.constant 0 : index
    %c0_48 = arith.constant 0 : index
    %79 = vector.load %arg11[%c0_47, %c0_48] : memref<32x32xbf16, #tpu.memory_space<vmem>>, vector<32x32xbf16>
    %cst_49 = arith.constant dense<0.000000e+00> : vector<32x32xf32>
    %80 = tpu.matmul %78, %79, %cst_49 {dimension_numbers = #tpu.dot_dimension_numbers<[1], [0], [0], [1], [0, 0, 1, 1], [], []>} : vector<32x32xbf16>, vector<32x32xbf16>, vector<32x32xf32> -> vector<32x32xf32>
    %c0_50 = arith.constant 0 : index
    %c0_51 = arith.constant 0 : index
    %81 = vector.load %arg12[%c0_50, %c0_51] : memref<1x32xf32, #tpu.memory_space<vmem>>, vector<1x32xf32>
    %82 = vector.broadcast %81 : vector<1x32xf32> to vector<32x32xf32>
    %83 = arith.addf %80, %82 : vector<32x32xf32>
    %84 = arith.addf %50, %83 : vector<32x32xf32>
    %85 = vector.extract_strided_slice %84 {offsets = [8, 0], sizes = [16, 32], strides = [1, 1]} : vector<32x32xf32> to vector<16x32xf32>
    %86 = arith.truncf %85 : vector<16x32xf32> to vector<16x32xbf16>
    %c0_52 = arith.constant 0 : index
    %c0_53 = arith.constant 0 : index
    %87 = vector.load %arg13[%c0_52, %c0_53] : memref<32x128xbf16, #tpu.memory_space<vmem>>, vector<32x128xbf16>
    %cst_54 = arith.constant dense<0.000000e+00> : vector<16x128xf32>
    %88 = tpu.matmul %86, %87, %cst_54 {dimension_numbers = #tpu.dot_dimension_numbers<[1], [0], [0], [1], [0, 0, 1, 1], [], []>} : vector<16x32xbf16>, vector<32x128xbf16>, vector<16x128xf32> -> vector<16x128xf32>
    %c0_55 = arith.constant 0 : index
    %c0_56 = arith.constant 0 : index
    %89 = vector.load %arg14[%c0_55, %c0_56] : memref<1x128xf32, #tpu.memory_space<vmem>>, vector<1x128xf32>
    %90 = vector.broadcast %89 : vector<1x128xf32> to vector<16x128xf32>
    %91 = arith.addf %88, %90 : vector<16x128xf32>
    %cst_57 = arith.constant 0.000000e+00 : f32
    %92 = vector.broadcast %cst_57 : f32 to vector<16x128xf32>
    %93 = arith.maximumf %91, %92 : vector<16x128xf32>
    %94 = arith.truncf %93 : vector<16x128xf32> to vector<16x128xbf16>
    %c0_58 = arith.constant 0 : index
    %c0_59 = arith.constant 0 : index
    %95 = vector.load %arg15[%c0_58, %c0_59] : memref<128x128xbf16, #tpu.memory_space<vmem>>, vector<128x128xbf16>
    %cst_60 = arith.constant dense<0.000000e+00> : vector<16x128xf32>
    %96 = tpu.matmul %94, %95, %cst_60 {dimension_numbers = #tpu.dot_dimension_numbers<[1], [0], [0], [1], [0, 0, 1, 1], [], []>} : vector<16x128xbf16>, vector<128x128xbf16>, vector<16x128xf32> -> vector<16x128xf32>
    %c0_61 = arith.constant 0 : index
    %c0_62 = arith.constant 0 : index
    %97 = vector.load %arg16[%c0_61, %c0_62] : memref<1x128xf32, #tpu.memory_space<vmem>>, vector<1x128xf32>
    %98 = vector.broadcast %97 : vector<1x128xf32> to vector<16x128xf32>
    %99 = arith.addf %96, %98 : vector<16x128xf32>
    %c0_63 = arith.constant 0 : index
    %c0_64 = arith.constant 0 : index
    %c0_65 = arith.constant 0 : index
    %c0_66 = arith.constant 0 : index
    %100 = vector.load %arg17[%c0_63, %c0_64, %c0_65, %c0_66] : memref<1x1x16x128xf32, #tpu.memory_space<vmem>>, vector<1x1x16x128xf32>
    %101 = vector.shape_cast %100 : vector<1x1x16x128xf32> to vector<16x128xf32>
    %102 = vector.shape_cast %99 : vector<16x128xf32> to vector<1x1x16x128xf32>
    tpu.vector_store %arg17[%c0_63, %c0_64, %c0_65, %c0_66], %102 {strides = array<i32>} : memref<1x1x16x128xf32, #tpu.memory_space<vmem>>, vector<1x1x16x128xf32>,
    return
  }
  func.func @transform_0(%arg0: i32, %arg1: i32) -> (i32, i32, i32, i32) {
    %c0_i32 = arith.constant 0 : i32
    %c0_i32_0 = arith.constant 0 : i32
    %c0_i32_1 = arith.constant 0 : i32
    return %arg0, %arg1, %c0_i32, %c0_i32_0 : i32, i32, i32, i32
  }
  func.func @transform_1(%arg0: i32, %arg1: i32) -> (i32, i32) {
    %c0_i32 = arith.constant 0 : i32
    %c0_i32_0 = arith.constant 0 : i32
    %c0_i32_1 = arith.constant 0 : i32
    return %c0_i32, %c0_i32_0 : i32, i32
  }
  func.func @transform_2(%arg0: i32, %arg1: i32) -> (i32, i32) {
    %c0_i32 = arith.constant 0 : i32
    %c0_i32_0 = arith.constant 0 : i32
    %c0_i32_1 = arith.constant 0 : i32
    return %c0_i32, %c0_i32_0 : i32, i32
  }
  func.func @transform_3(%arg0: i32, %arg1: i32) -> (i32, i32, i32) {
    %c0_i32 = arith.constant 0 : i32
    %c0_i32_0 = arith.constant 0 : i32
    %c0_i32_1 = arith.constant 0 : i32
    %c0_i32_2 = arith.constant 0 : i32
    return %c0_i32, %c0_i32_0, %c0_i32_1 : i32, i32, i32
  }
  func.func @transform_4(%arg0: i32, %arg1: i32) -> (i32, i32) {
    %c0_i32 = arith.constant 0 : i32
    %c0_i32_0 = arith.constant 0 : i32
    %c0_i32_1 = arith.constant 0 : i32
    return %c0_i32, %c0_i32_0 : i32, i32
  }
  func.func @transform_5(%arg0: i32, %arg1: i32) -> (i32, i32) {
    %c0_i32 = arith.constant 0 : i32
    %c0_i32_0 = arith.constant 0 : i32
    %c0_i32_1 = arith.constant 0 : i32
    return %c0_i32, %c0_i32_0 : i32, i32
  }
  func.func @transform_6(%arg0: i32, %arg1: i32) -> (i32, i32) {
    %c0_i32 = arith.constant 0 : i32
    %c0_i32_0 = arith.constant 0 : i32
    %c0_i32_1 = arith.constant 0 : i32
    return %c0_i32, %c0_i32_0 : i32, i32
  }
  func.func @transform_7(%arg0: i32, %arg1: i32) -> (i32, i32, i32) {
    %c0_i32 = arith.constant 0 : i32
    %c0_i32_0 = arith.constant 0 : i32
    %c0_i32_1 = arith.constant 0 : i32
    %c0_i32_2 = arith.constant 0 : i32
    return %c0_i32, %c0_i32_0, %c0_i32_1 : i32, i32, i32
  }
  func.func @transform_8(%arg0: i32, %arg1: i32) -> (i32, i32) {
    %c0_i32 = arith.constant 0 : i32
    %c0_i32_0 = arith.constant 0 : i32
    %c0_i32_1 = arith.constant 0 : i32
    return %c0_i32, %c0_i32_0 : i32, i32
  }
  func.func @transform_9(%arg0: i32, %arg1: i32) -> (i32, i32) {
    %c0_i32 = arith.constant 0 : i32
    %c0_i32_0 = arith.constant 0 : i32
    %c0_i32_1 = arith.constant 0 : i32
    return %c0_i32, %c0_i32_0 : i32, i32
  }
  func.func @transform_10(%arg0: i32, %arg1: i32) -> (i32, i32) {
    %c0_i32 = arith.constant 0 : i32
    %c0_i32_0 = arith.constant 0 : i32
    %c0_i32_1 = arith.constant 0 : i32
    return %c0_i32, %c0_i32_0 : i32, i32
  }
  func.func @transform_11(%arg0: i32, %arg1: i32) -> (i32, i32) {
    %c0_i32 = arith.constant 0 : i32
    %c0_i32_0 = arith.constant 0 : i32
    %c0_i32_1 = arith.constant 0 : i32
    return %c0_i32, %c0_i32_0 : i32, i32
  }
  func.func @transform_12(%arg0: i32, %arg1: i32) -> (i32, i32) {
    %c0_i32 = arith.constant 0 : i32
    %c0_i32_0 = arith.constant 0 : i32
    %c0_i32_1 = arith.constant 0 : i32
    return %c0_i32, %c0_i32_0 : i32, i32
  }
  func.func @transform_13(%arg0: i32, %arg1: i32) -> (i32, i32) {
    %c0_i32 = arith.constant 0 : i32
    %c0_i32_0 = arith.constant 0 : i32
    %c0_i32_1 = arith.constant 0 : i32
    return %c0_i32, %c0_i32_0 : i32, i32
  }
  func.func @transform_14(%arg0: i32, %arg1: i32) -> (i32, i32) {
    %c0_i32 = arith.constant 0 : i32
    %c0_i32_0 = arith.constant 0 : i32
    %c0_i32_1 = arith.constant 0 : i32
    return %c0_i32, %c0_i32_0 : i32, i32
  }
  func.func @transform_15(%arg0: i32, %arg1: i32) -> (i32, i32, i32, i32) {
    %c0_i32 = arith.constant 0 : i32
    %c0_i32_0 = arith.constant 0 : i32
    %c0_i32_1 = arith.constant 0 : i32
    return %arg0, %arg1, %c0_i32, %c0_i32_0 : i32, i32, i32, i32
  }
}

</mosaic_0001>

<llo_original>
// kernel: tpu_custom_call.1
$region0: #{tpu_custom_call.1}
  #allocation0 [shape = 'u32[]', space=smem, size = 0x4, offset = 0x4, fixed_abs, tag = 'smem constant byte address 0x4 - core index']
  #allocation1 [shape = 'u32[144,128]{1,0:T(1,128)}', space=vmem, size = 0x12000, scoped, tag = 'internal scratch']
  %s0 = inlined_call_operand.hbm [shape: bf16[2,1,32,32], index: 0, kind: input, shape index: {}]
  %s1 = inlined_call_operand.hbm [shape: bf16[32,32], index: 1, kind: input, shape index: {}]
  %s2 = inlined_call_operand.hbm [shape: f32[1,32], index: 2, kind: input, shape index: {}]
  %s3 = inlined_call_operand.hbm [shape: bf16[3,32,32], index: 3, kind: input, shape index: {}]
  %s4 = inlined_call_operand.hbm [shape: f32[1,32], index: 4, kind: input, shape index: {}]
  %s5 = inlined_call_operand.hbm [shape: bf16[32,32], index: 5, kind: input, shape index: {}]
  %s6 = inlined_call_operand.hbm [shape: f32[1,32], index: 6, kind: input, shape index: {}]
  %s7 = inlined_call_operand.hbm [shape: bf16[3,32,32], index: 7, kind: input, shape index: {}]
  %s8 = inlined_call_operand.hbm [shape: f32[1,32], index: 8, kind: input, shape index: {}]
  %s9 = inlined_call_operand.hbm [shape: bf16[32,32], index: 9, kind: input, shape index: {}]
  %s10 = inlined_call_operand.hbm [shape: f32[1,32], index: 10, kind: input, shape index: {}]
  %s11 = inlined_call_operand.hbm [shape: bf16[32,128], index: 11, kind: input, shape index: {}]
  %s12 = inlined_call_operand.hbm [shape: f32[1,128], index: 12, kind: input, shape index: {}]
  %s13 = inlined_call_operand.hbm [shape: bf16[128,128], index: 13, kind: input, shape index: {}]
  %s14 = inlined_call_operand.hbm [shape: f32[1,128], index: 14, kind: input, shape index: {}]
  %s15 = inlined_call_operand.hbm [shape: f32[2,1,16,128], index: 15, kind: output, shape index: {}]
  %s16 = sld [smem:[#allocation0]]
  $region153: #{tpu_custom_call.1} parent=0
    _
  %s18 = ssub.s32 1, %s16
  %s19 = scalar_select 0, %s18, %s16
  $region1: #{tpu_custom_call.1} parent=0
    #allocation2 [shape = 'u8[16384]{0}', space=vmem, size = 0x4000, scoped, tag = 'input window, operand 0']
    #allocation3 [shape = 's32[2]{0}', space=sflag, size = 0x8, scoped, tag = 'scoped memory for tpu_custom_call.1']
    #allocation4 [shape = 's32[2]{0}', space=sflag, size = 0x8, scoped, tag = 'scoped memory for tpu_custom_call.1']
    #allocation5 [shape = 'u8[8192]{0}', space=vmem, size = 0x2000, scoped, tag = 'input window, operand 1, single buffered']
    #allocation6 [shape = 's32[1]{0}', space=sflag, size = 0x4, scoped, tag = 'scoped memory for tpu_custom_call.1']
    #allocation7 [shape = 'u8[512]{0}', space=vmem, size = 0x400, scoped, tag = 'input window, operand 2, single buffered']
    #allocation8 [shape = 'u8[24576]{0}', space=vmem, size = 0x6000, scoped, tag = 'input window, operand 3, single buffered']
    #allocation9 [shape = 's32[1]{0}', space=sflag, size = 0x4, scoped, tag = 'scoped memory for tpu_custom_call.1']
    #allocation10 [shape = 'u8[512]{0}', space=vmem, size = 0x400, scoped, tag = 'input window, operand 4, single buffered']
    #allocation11 [shape = 'u8[8192]{0}', space=vmem, size = 0x2000, scoped, tag = 'input window, operand 5, single buffered']
    #allocation12 [shape = 's32[1]{0}', space=sflag, size = 0x4, scoped, tag = 'scoped memory for tpu_custom_call.1']
    #allocation13 [shape = 'u8[512]{0}', space=vmem, size = 0x400, scoped, tag = 'input window, operand 6, single buffered']
    #allocation14 [shape = 'u8[24576]{0}', space=vmem, size = 0x6000, scoped, tag = 'input window, operand 7, single buffered']
    #allocation15 [shape = 's32[1]{0}', space=sflag, size = 0x4, scoped, tag = 'scoped memory for tpu_custom_call.1']
    #allocation16 [shape = 'u8[512]{0}', space=vmem, size = 0x400, scoped, tag = 'input window, operand 8, single buffered']
    #allocation17 [shape = 'u8[8192]{0}', space=vmem, size = 0x2000, scoped, tag = 'input window, operand 9, single buffered']
    #allocation18 [shape = 's32[1]{0}', space=sflag, size = 0x4, scoped, tag = 'scoped memory for tpu_custom_call.1']
    #allocation19 [shape = 'u8[512]{0}', space=vmem, size = 0x400, scoped, tag = 'input window, operand 10, single buffered']
    #allocation20 [shape = 'u8[8192]{0}', space=vmem, size = 0x2000, scoped, tag = 'input window, operand 11, single buffered']
    #allocation21 [shape = 's32[1]{0}', space=sflag, size = 0x4, scoped, tag = 'scoped memory for tpu_custom_call.1']
    #allocation22 [shape = 'u8[512]{0}', space=vmem, size = 0x400, scoped, tag = 'input window, operand 12, single buffered']
    #allocation23 [shape = 'u8[32768]{0}', space=vmem, size = 0x8000, scoped, tag = 'input window, operand 13, single buffered']
    #allocation24 [shape = 's32[1]{0}', space=sflag, size = 0x4, scoped, tag = 'scoped memory for tpu_custom_call.1']
    #allocation25 [shape = 'u8[512]{0}', space=vmem, size = 0x400, scoped, tag = 'input window, operand 14, single buffered']
    #allocation26 [shape = 'u8[16384]{0}', space=vmem, size = 0x4000, scoped, tag = 'output window, operand 0']
    %20 = vsyncpa [#allocation3], 0
    %s21 = scalar_lea.sflag [#allocation3], 1
    %22 = vsyncpa %s21, 0
    %23 = vsyncpa [#allocation6], 0
    %24 = vsyncpa [#allocation9], 0
    %25 = vsyncpa [#allocation12], 0
    %26 = vsyncpa [#allocation15], 0
    %27 = vsyncpa [#allocation18], 0
    %28 = vsyncpa [#allocation21], 0
    %29 = vsyncpa [#allocation24], 0
    %30 = vsyncpa [#allocation4], 0
    %s31 = scalar_lea.sflag [#allocation4], 1
    %32 = vsyncpa %s31, 0
    loop: start=0, step=1, limit=4
    $region2: #{tpu_custom_call.1} parent=1 // loop_pre_header
      _
    $region3: #{tpu_custom_call.1} parent=1 // loop_header
      %s34 = sphi 0, %s38
      %p35 = scmp.ge.s32.totalorder %s34, 4
      %s41 = sphi 0, %s53
      %s42 = sphi 0, %s49
      %s43 = sphi 0, %s41
      %s44 = sphi 0, %s42
      %s45 = sphi 0, %s43
      %s46 = sphi 0, %s44
      %s58 = sphi 0, %s60
      %s61 = sphi 0, %s58
      %s62 = sphi 0, %s61
      %s78 = sphi 0, %s62
      %s82 = sphi 0, %s82
      %s84 = sphi 0, %s82
      %s85 = sphi 0, %s84
      %s99 = sphi 0, %s85
      %s103 = sphi 0, %s103
      %s105 = sphi 0, %s103
      %s106 = sphi 0, %s105
      %s120 = sphi 0, %s106
      %s124 = sphi 0, %s124
      %s126 = sphi 0, %s124
      %s127 = sphi 0, %s126
      %s141 = sphi 0, %s127
      %s145 = sphi 0, %s145
      %s147 = sphi 0, %s145
      %s148 = sphi 0, %s147
      %s162 = sphi 0, %s148
      %s166 = sphi 0, %s166
      %s168 = sphi 0, %s166
      %s169 = sphi 0, %s168
      %s183 = sphi 0, %s169
      %s187 = sphi 0, %s187
      %s189 = sphi 0, %s187
      %s190 = sphi 0, %s189
      %s204 = sphi 0, %s190
      %s208 = sphi 0, %s208
      %s210 = sphi 0, %s208
      %s211 = sphi 0, %s210
      %s225 = sphi 0, %s211
      %s229 = sphi 0, %s229
      %s231 = sphi 0, %s229
      %s232 = sphi 0, %s231
      %s246 = sphi 0, %s232
      %s250 = sphi 0, %s250
      %s252 = sphi 0, %s250
      %s253 = sphi 0, %s252
      %s267 = sphi 0, %s253
      %s271 = sphi 0, %s271
      %s273 = sphi 0, %s271
      %s274 = sphi 0, %s273
      %s288 = sphi 0, %s274
      %s292 = sphi 0, %s292
      %s294 = sphi 0, %s292
      %s295 = sphi 0, %s294
      %s309 = sphi 0, %s295
      %s313 = sphi 0, %s313
      %s315 = sphi 0, %s313
      %s316 = sphi 0, %s315
      %s330 = sphi 0, %s316
      %s334 = sphi 0, %s334
      %s336 = sphi 0, %s334
      %s337 = sphi 0, %s336
      %s351 = sphi 0, %s337
      %s355 = sphi 0, %s355
      %s357 = sphi 0, %s355
      %s358 = sphi 0, %s357
      %s372 = sphi 0, %s358
      %s380 = sphi 0, %s382
      %s383 = sphi 0, %s380
      %s384 = sphi 0, %s383
      %s400 = sphi 0, %s384
    $region4: #{tpu_custom_call.1} parent=1 // loop_header_branch
      %37 = sbr.rel (%p35) target = $region8
    $region5: #{tpu_custom_call.1} parent=1 // loop_body
      %s39 = ssub.s32 %s34, 1
      %s40 = ssub.s32 %s34, 2
      %s47 = sadd.s32 1, %s42
      %p48 = scmp.ge.s32.totalorder %s47, 1
      %s49 = scalar_select %p48, 0, %s47
      %s50 = sadd.s32 1, %s41
      %s51 = scalar_select %p48, %s50, %s41
      %p52 = scmp.ge.s32.totalorder %s51, 2
      %s53 = scalar_select %p52, 0, %s51
      %s54 = ssub.s32 %s41, %s53
      %s55 = ssub.s32 %s42, %s49
      %s56 = sor.u32 %s54, %s55
      %p57 = scmp.eq.s32.totalorder %s56, 0
      %s59 = sadd.s32 %s58, 1
      %s60 = scalar_select %p57, %s58, %s59
      %p63 = pneg %p57
      %p64 = scmp.eq.s32.totalorder %s34, 1
      %p65 = por %p63, %p64
      %p66 = scmp.ne.s32.totalorder %s58, %s61
      %p67 = scmp.eq.s32.totalorder %s34, 0
      %p68 = por %p66, %p67
      %p69 = scmp.ne.s32.totalorder %s58, %s61
      %p70 = scmp.eq.s32.totalorder %s39, 1
      %p71 = por %p69, %p70
      %p72 = scmp.ne.s32.totalorder %s61, %s62
      %p73 = scmp.eq.s32.totalorder %s39, 0
      %p74 = por %p72, %p73
      %p75 = scmp.ne.s32.totalorder %s61, %s62
      %p76 = scmp.eq.s32.totalorder %s40, 1
      %p77 = por %p75, %p76
      %p79 = scmp.ne.s32.totalorder %s62, %s78
      %p80 = scmp.eq.s32.totalorder %s40, 0
      %p81 = por %p79, %p80
      %s83 = sadd.s32 %s82, 1
      %p86 = scmp.eq.s32.totalorder %s34, 1
      %p87 = scmp.ne.s32.totalorder %s82, %s84
      %p88 = scmp.eq.s32.totalorder %s34, 0
      %p89 = por %p87, %p88
      %p90 = scmp.ne.s32.totalorder %s82, %s84
      %p91 = scmp.eq.s32.totalorder %s39, 1
      %p92 = por %p90, %p91
      %p93 = scmp.ne.s32.totalorder %s84, %s85
      %p94 = scmp.eq.s32.totalorder %s39, 0
      %p95 = por %p93, %p94
      %p96 = scmp.ne.s32.totalorder %s84, %s85
      %p97 = scmp.eq.s32.totalorder %s40, 1
      %p98 = por %p96, %p97
      %p100 = scmp.ne.s32.totalorder %s85, %s99
      %p101 = scmp.eq.s32.totalorder %s40, 0
      %p102 = por %p100, %p101
      %s104 = sadd.s32 %s103, 1
      %p107 = scmp.eq.s32.totalorder %s34, 1
      %p108 = scmp.ne.s32.totalorder %s103, %s105
      %p109 = scmp.eq.s32.totalorder %s34, 0
      %p110 = por %p108, %p109
      %p111 = scmp.ne.s32.totalorder %s103, %s105
      %p112 = scmp.eq.s32.totalorder %s39, 1
      %p113 = por %p111, %p112
      %p114 = scmp.ne.s32.totalorder %s105, %s106
      %p115 = scmp.eq.s32.totalorder %s39, 0
      %p116 = por %p114, %p115
      %p117 = scmp.ne.s32.totalorder %s105, %s106
      %p118 = scmp.eq.s32.totalorder %s40, 1
      %p119 = por %p117, %p118
      %p121 = scmp.ne.s32.totalorder %s106, %s120
      %p122 = scmp.eq.s32.totalorder %s40, 0
      %p123 = por %p121, %p122
      %s125 = sadd.s32 %s124, 1
      %p128 = scmp.eq.s32.totalorder %s34, 1
      %p129 = scmp.ne.s32.totalorder %s124, %s126
      %p130 = scmp.eq.s32.totalorder %s34, 0
      %p131 = por %p129, %p130
      %p132 = scmp.ne.s32.totalorder %s124, %s126
      %p133 = scmp.eq.s32.totalorder %s39, 1
      %p134 = por %p132, %p133
      %p135 = scmp.ne.s32.totalorder %s126, %s127
      %p136 = scmp.eq.s32.totalorder %s39, 0
      %p137 = por %p135, %p136
      %p138 = scmp.ne.s32.totalorder %s126, %s127
      %p139 = scmp.eq.s32.totalorder %s40, 1
      %p140 = por %p138, %p139
      %p142 = scmp.ne.s32.totalorder %s127, %s141
      %p143 = scmp.eq.s32.totalorder %s40, 0
      %p144 = por %p142, %p143
      %s146 = sadd.s32 %s145, 1
      %p149 = scmp.eq.s32.totalorder %s34, 1
      %p150 = scmp.ne.s32.totalorder %s145, %s147
      %p151 = scmp.eq.s32.totalorder %s34, 0
      %p152 = por %p150, %p151
      %p153 = scmp.ne.s32.totalorder %s145, %s147
      %p154 = scmp.eq.s32.totalorder %s39, 1
      %p155 = por %p153, %p154
      %p156 = scmp.ne.s32.totalorder %s147, %s148
      %p157 = scmp.eq.s32.totalorder %s39, 0
      %p158 = por %p156, %p157
      %p159 = scmp.ne.s32.totalorder %s147, %s148
      %p160 = scmp.eq.s32.totalorder %s40, 1
      %p161 = por %p159, %p160
      %p163 = scmp.ne.s32.totalorder %s148, %s162
      %p164 = scmp.eq.s32.totalorder %s40, 0
      %p165 = por %p163, %p164
      %s167 = sadd.s32 %s166, 1
      %p170 = scmp.eq.s32.totalorder %s34, 1
      %p171 = scmp.ne.s32.totalorder %s166, %s168
      %p172 = scmp.eq.s32.totalorder %s34, 0
      %p173 = por %p171, %p172
      %p174 = scmp.ne.s32.totalorder %s166, %s168
      %p175 = scmp.eq.s32.totalorder %s39, 1
      %p176 = por %p174, %p175
      %p177 = scmp.ne.s32.totalorder %s168, %s169
      %p178 = scmp.eq.s32.totalorder %s39, 0
      %p179 = por %p177, %p178
      %p180 = scmp.ne.s32.totalorder %s168, %s169
      %p181 = scmp.eq.s32.totalorder %s40, 1
      %p182 = por %p180, %p181
      %p184 = scmp.ne.s32.totalorder %s169, %s183
      %p185 = scmp.eq.s32.totalorder %s40, 0
      %p186 = por %p184, %p185
      %s188 = sadd.s32 %s187, 1
      %p191 = scmp.eq.s32.totalorder %s34, 1
      %p192 = scmp.ne.s32.totalorder %s187, %s189
      %p193 = scmp.eq.s32.totalorder %s34, 0
      %p194 = por %p192, %p193
      %p195 = scmp.ne.s32.totalorder %s187, %s189
      %p196 = scmp.eq.s32.totalorder %s39, 1
      %p197 = por %p195, %p196
      %p198 = scmp.ne.s32.totalorder %s189, %s190
      %p199 = scmp.eq.s32.totalorder %s39, 0
      %p200 = por %p198, %p199
      %p201 = scmp.ne.s32.totalorder %s189, %s190
      %p202 = scmp.eq.s32.totalorder %s40, 1
      %p203 = por %p201, %p202
      %p205 = scmp.ne.s32.totalorder %s190, %s204
      %p206 = scmp.eq.s32.totalorder %s40, 0
      %p207 = por %p205, %p206
      %s209 = sadd.s32 %s208, 1
      %p212 = scmp.eq.s32.totalorder %s34, 1
      %p213 = scmp.ne.s32.totalorder %s208, %s210
      %p214 = scmp.eq.s32.totalorder %s34, 0
      %p215 = por %p213, %p214
      %p216 = scmp.ne.s32.totalorder %s208, %s210
      %p217 = scmp.eq.s32.totalorder %s39, 1
      %p218 = por %p216, %p217
      %p219 = scmp.ne.s32.totalorder %s210, %s211
      %p220 = scmp.eq.s32.totalorder %s39, 0
      %p221 = por %p219, %p220
      %p222 = scmp.ne.s32.totalorder %s210, %s211
      %p223 = scmp.eq.s32.totalorder %s40, 1
      %p224 = por %p222, %p223
      %p226 = scmp.ne.s32.totalorder %s211, %s225
      %p227 = scmp.eq.s32.totalorder %s40, 0
      %p228 = por %p226, %p227
      %s230 = sadd.s32 %s229, 1
      %p233 = scmp.eq.s32.totalorder %s34, 1
      %p234 = scmp.ne.s32.totalorder %s229, %s231
      %p235 = scmp.eq.s32.totalorder %s34, 0
      %p236 = por %p234, %p235
      %p237 = scmp.ne.s32.totalorder %s229, %s231
      %p238 = scmp.eq.s32.totalorder %s39, 1
      %p239 = por %p237, %p238
      %p240 = scmp.ne.s32.totalorder %s231, %s232
      %p241 = scmp.eq.s32.totalorder %s39, 0
      %p242 = por %p240, %p241
      %p243 = scmp.ne.s32.totalorder %s231, %s232
      %p244 = scmp.eq.s32.totalorder %s40, 1
      %p245 = por %p243, %p244
      %p247 = scmp.ne.s32.totalorder %s232, %s246
      %p248 = scmp.eq.s32.totalorder %s40, 0
      %p249 = por %p247, %p248
      %s251 = sadd.s32 %s250, 1
      %p254 = scmp.eq.s32.totalorder %s34, 1
      %p255 = scmp.ne.s32.totalorder %s250, %s252
      %p256 = scmp.eq.s32.totalorder %s34, 0
      %p257 = por %p255, %p256
      %p258 = scmp.ne.s32.totalorder %s250, %s252
      %p259 = scmp.eq.s32.totalorder %s39, 1
      %p260 = por %p258, %p259
      %p261 = scmp.ne.s32.totalorder %s252, %s253
      %p262 = scmp.eq.s32.totalorder %s39, 0
      %p263 = por %p261, %p262
      %p264 = scmp.ne.s32.totalorder %s252, %s253
      %p265 = scmp.eq.s32.totalorder %s40, 1
      %p266 = por %p264, %p265
      %p268 = scmp.ne.s32.totalorder %s253, %s267
      %p269 = scmp.eq.s32.totalorder %s40, 0
      %p270 = por %p268, %p269
      %s272 = sadd.s32 %s271, 1
      %p275 = scmp.eq.s32.totalorder %s34, 1
      %p276 = scmp.ne.s32.totalorder %s271, %s273
      %p277 = scmp.eq.s32.totalorder %s34, 0
      %p278 = por %p276, %p277
      %p279 = scmp.ne.s32.totalorder %s271, %s273
      %p280 = scmp.eq.s32.totalorder %s39, 1
      %p281 = por %p279, %p280
      %p282 = scmp.ne.s32.totalorder %s273, %s274
      %p283 = scmp.eq.s32.totalorder %s39, 0
      %p284 = por %p282, %p283
      %p285 = scmp.ne.s32.totalorder %s273, %s274
      %p286 = scmp.eq.s32.totalorder %s40, 1
      %p287 = por %p285, %p286
      %p289 = scmp.ne.s32.totalorder %s274, %s288
      %p290 = scmp.eq.s32.totalorder %s40, 0
      %p291 = por %p289, %p290
      %s293 = sadd.s32 %s292, 1
      %p296 = scmp.eq.s32.totalorder %s34, 1
      %p297 = scmp.ne.s32.totalorder %s292, %s294
      %p298 = scmp.eq.s32.totalorder %s34, 0
      %p299 = por %p297, %p298
      %p300 = scmp.ne.s32.totalorder %s292, %s294
      %p301 = scmp.eq.s32.totalorder %s39, 1
      %p302 = por %p300, %p301
      %p303 = scmp.ne.s32.totalorder %s294, %s295
      %p304 = scmp.eq.s32.totalorder %s39, 0
      %p305 = por %p303, %p304
      %p306 = scmp.ne.s32.totalorder %s294, %s295
      %p307 = scmp.eq.s32.totalorder %s40, 1
      %p308 = por %p306, %p307
      %p310 = scmp.ne.s32.totalorder %s295, %s309
      %p311 = scmp.eq.s32.totalorder %s40, 0
      %p312 = por %p310, %p311
      %s314 = sadd.s32 %s313, 1
      %p317 = scmp.eq.s32.totalorder %s34, 1
      %p318 = scmp.ne.s32.totalorder %s313, %s315
      %p319 = scmp.eq.s32.totalorder %s34, 0
      %p320 = por %p318, %p319
      %p321 = scmp.ne.s32.totalorder %s313, %s315
      %p322 = scmp.eq.s32.totalorder %s39, 1
      %p323 = por %p321, %p322
      %p324 = scmp.ne.s32.totalorder %s315, %s316
      %p325 = scmp.eq.s32.totalorder %s39, 0
      %p326 = por %p324, %p325
      %p327 = scmp.ne.s32.totalorder %s315, %s316
      %p328 = scmp.eq.s32.totalorder %s40, 1
      %p329 = por %p327, %p328
      %p331 = scmp.ne.s32.totalorder %s316, %s330
      %p332 = scmp.eq.s32.totalorder %s40, 0
      %p333 = por %p331, %p332
      %s335 = sadd.s32 %s334, 1
      %p338 = scmp.eq.s32.totalorder %s34, 1
      %p339 = scmp.ne.s32.totalorder %s334, %s336
      %p340 = scmp.eq.s32.totalorder %s34, 0
      %p341 = por %p339, %p340
      %p342 = scmp.ne.s32.totalorder %s334, %s336
      %p343 = scmp.eq.s32.totalorder %s39, 1
      %p344 = por %p342, %p343
      %p345 = scmp.ne.s32.totalorder %s336, %s337
      %p346 = scmp.eq.s32.totalorder %s39, 0
      %p347 = por %p345, %p346
      %p348 = scmp.ne.s32.totalorder %s336, %s337
      %p349 = scmp.eq.s32.totalorder %s40, 1
      %p350 = por %p348, %p349
      %p352 = scmp.ne.s32.totalorder %s337, %s351
      %p353 = scmp.eq.s32.totalorder %s40, 0
      %p354 = por %p352, %p353
      %s356 = sadd.s32 %s355, 1
      %p359 = scmp.eq.s32.totalorder %s34, 1
      %p360 = scmp.ne.s32.totalorder %s355, %s357
      %p361 = scmp.eq.s32.totalorder %s34, 0
      %p362 = por %p360, %p361
      %p363 = scmp.ne.s32.totalorder %s355, %s357
      %p364 = scmp.eq.s32.totalorder %s39, 1
      %p365 = por %p363, %p364
      %p366 = scmp.ne.s32.totalorder %s357, %s358
      %p367 = scmp.eq.s32.totalorder %s39, 0
      %p368 = por %p366, %p367
      %p369 = scmp.ne.s32.totalorder %s357, %s358
      %p370 = scmp.eq.s32.totalorder %s40, 1
      %p371 = por %p369, %p370
      %p373 = scmp.ne.s32.totalorder %s358, %s372
      %p374 = scmp.eq.s32.totalorder %s40, 0
      %p375 = por %p373, %p374
      %s376 = ssub.s32 %s41, %s53
      %s377 = ssub.s32 %s42, %s49
      %s378 = sor.u32 %s376, %s377
      %p379 = scmp.eq.s32.totalorder %s378, 0
      %s381 = sadd.s32 %s380, 1
      %s382 = scalar_select %p379, %s380, %s381
      %p385 = pneg %p379
      %p386 = scmp.eq.s32.totalorder %s34, 1
      %p387 = por %p385, %p386
      %p388 = scmp.ne.s32.totalorder %s380, %s383
      %p389 = scmp.eq.s32.totalorder %s34, 0
      %p390 = por %p388, %p389
      %p391 = scmp.ne.s32.totalorder %s380, %s383
      %p392 = scmp.eq.s32.totalorder %s39, 1
      %p393 = por %p391, %p392
      %p394 = scmp.ne.s32.totalorder %s383, %s384
      %p395 = scmp.eq.s32.totalorder %s39, 0
      %p396 = por %p394, %p395
      %p397 = scmp.ne.s32.totalorder %s383, %s384
      %p398 = scmp.eq.s32.totalorder %s40, 1
      %p399 = por %p397, %p398
      %p401 = scmp.ne.s32.totalorder %s384, %s400
      %p402 = scmp.eq.s32.totalorder %s40, 0
      %p403 = por %p401, %p402
      %p404 = scmp.le.s32.totalorder 1, %s34
      %p405 = scmp.lt.s32.totalorder %s34, 3
      %p406 = pnand %p404, %p405
      %p407 = pneg %p406
      // Predicated region
      $region9: #{tpu_custom_call.1} parent=5 // pred_check
        _
      $region10: #{tpu_custom_call.1} parent=5 // pred_check_branch
        %409 = sbr.rel (%p406) target = $region12
      $region11: #{tpu_custom_call.1} parent=5 // pred_region
        %s410 = ssub.s32 %s34, 1
        // Predicated region
        $region13: #{tpu_custom_call.1} parent=11 // pred_check
          %p411 = pneg %p95
        $region14: #{tpu_custom_call.1} parent=11 // pred_check_branch
          %413 = sbr.rel (%p411) target = $region16
        $region15: #{tpu_custom_call.1} parent=11 // pred_region
          %s415 = ssub.s32 256, 256
          %416 = vsyncadd [#allocation6], %s415
          %s417 = sshll.u32 [#allocation5], 4
          %s418 = int_to_ptr.vmem [resolvable:$true] %s417
          %423 = dma.hbm_to_vmem [thread:$0]  %s1, 256, %s418, [#allocation6], 64, 64, 4
        $region16: #{tpu_custom_call.1} parent=11 // pred_fallthru
          _
        // Predicated region
        $region17: #{tpu_custom_call.1} parent=11 // pred_check
          %p424 = pneg %p116
        $region18: #{tpu_custom_call.1} parent=11 // pred_check_branch
          %426 = sbr.rel (%p424) target = $region20
        $region19: #{tpu_custom_call.1} parent=11 // pred_region
          %s428 = ssub.s32 16, 16
          %429 = vsyncadd [#allocation6], %s428
          %s431 = sshll.u32 [#allocation7], 4
          %s432 = int_to_ptr.vmem [resolvable:$true] %s431
          %434 = dma.hbm_to_vmem [thread:$0]  %s2, 16, %s432, [#allocation6]
        $region20: #{tpu_custom_call.1} parent=11 // pred_fallthru
          _
        // Predicated region
        $region21: #{tpu_custom_call.1} parent=11 // pred_check
          %p435 = pneg %p137
        $region22: #{tpu_custom_call.1} parent=11 // pred_check_branch
          %437 = sbr.rel (%p435) target = $region24
        $region23: #{tpu_custom_call.1} parent=11 // pred_region
          %s439 = ssub.s32 768, 768
          %440 = vsyncadd [#allocation9], %s439
          %s441 = sshll.u32 [#allocation8], 4
          %s442 = int_to_ptr.vmem [resolvable:$true] %s441
          %447 = dma.hbm_to_vmem [thread:$0]  %s3, 768, %s442, [#allocation9], 64, 64, 4
        $region24: #{tpu_custom_call.1} parent=11 // pred_fallthru
          _
        // Predicated region
        $region25: #{tpu_custom_call.1} parent=11 // pred_check
          %p448 = pneg %p158
        $region26: #{tpu_custom_call.1} parent=11 // pred_check_branch
          %450 = sbr.rel (%p448) target = $region28
        $region27: #{tpu_custom_call.1} parent=11 // pred_region
          %s452 = ssub.s32 16, 16
          %453 = vsyncadd [#allocation9], %s452
          %s455 = sshll.u32 [#allocation10], 4
          %s456 = int_to_ptr.vmem [resolvable:$true] %s455
          %458 = dma.hbm_to_vmem [thread:$0]  %s4, 16, %s456, [#allocation9]
        $region28: #{tpu_custom_call.1} parent=11 // pred_fallthru
          _
        // Predicated region
        $region29: #{tpu_custom_call.1} parent=11 // pred_check
          %p459 = pneg %p179
        $region30: #{tpu_custom_call.1} parent=11 // pred_check_branch
          %461 = sbr.rel (%p459) target = $region32
        $region31: #{tpu_custom_call.1} parent=11 // pred_region
          %s463 = ssub.s32 256, 256
          %464 = vsyncadd [#allocation12], %s463
          %s465 = sshll.u32 [#allocation11], 4
          %s466 = int_to_ptr.vmem [resolvable:$true] %s465
          %471 = dma.hbm_to_vmem [thread:$0]  %s5, 256, %s466, [#allocation12], 64, 64, 4
        $region32: #{tpu_custom_call.1} parent=11 // pred_fallthru
          _
        // Predicated region
        $region33: #{tpu_custom_call.1} parent=11 // pred_check
          %p472 = pneg %p200
        $region34: #{tpu_custom_call.1} parent=11 // pred_check_branch
          %474 = sbr.rel (%p472) target = $region36
        $region35: #{tpu_custom_call.1} parent=11 // pred_region
          %s476 = ssub.s32 16, 16
          %477 = vsyncadd [#allocation12], %s476
          %s479 = sshll.u32 [#allocation13], 4
          %s480 = int_to_ptr.vmem [resolvable:$true] %s479
          %482 = dma.hbm_to_vmem [thread:$0]  %s6, 16, %s480, [#allocation12]
        $region36: #{tpu_custom_call.1} parent=11 // pred_fallthru
          _
        // Predicated region
        $region37: #{tpu_custom_call.1} parent=11 // pred_check
          %p483 = pneg %p221
        $region38: #{tpu_custom_call.1} parent=11 // pred_check_branch
          %485 = sbr.rel (%p483) target = $region40
        $region39: #{tpu_custom_call.1} parent=11 // pred_region
          %s487 = ssub.s32 768, 768
          %488 = vsyncadd [#allocation15], %s487
          %s489 = sshll.u32 [#allocation14], 4
          %s490 = int_to_ptr.vmem [resolvable:$true] %s489
          %495 = dma.hbm_to_vmem [thread:$0]  %s7, 768, %s490, [#allocation15], 64, 64, 4
        $region40: #{tpu_custom_call.1} parent=11 // pred_fallthru
          _
        // Predicated region
        $region41: #{tpu_custom_call.1} parent=11 // pred_check
          %p496 = pneg %p242
        $region42: #{tpu_custom_call.1} parent=11 // pred_check_branch
          %498 = sbr.rel (%p496) target = $region44
        $region43: #{tpu_custom_call.1} parent=11 // pred_region
          %s500 = ssub.s32 16, 16
          %501 = vsyncadd [#allocation15], %s500
          %s503 = sshll.u32 [#allocation16], 4
          %s504 = int_to_ptr.vmem [resolvable:$true] %s503
          %506 = dma.hbm_to_vmem [thread:$0]  %s8, 16, %s504, [#allocation15]
        $region44: #{tpu_custom_call.1} parent=11 // pred_fallthru
          _
        // Predicated region
        $region45: #{tpu_custom_call.1} parent=11 // pred_check
          %p507 = pneg %p263
        $region46: #{tpu_custom_call.1} parent=11 // pred_check_branch
          %509 = sbr.rel (%p507) target = $region48
        $region47: #{tpu_custom_call.1} parent=11 // pred_region
          %s511 = ssub.s32 256, 256
          %512 = vsyncadd [#allocation18], %s511
          %s513 = sshll.u32 [#allocation17], 4
          %s514 = int_to_ptr.vmem [resolvable:$true] %s513
          %519 = dma.hbm_to_vmem [thread:$0]  %s9, 256, %s514, [#allocation18], 64, 64, 4
        $region48: #{tpu_custom_call.1} parent=11 // pred_fallthru
          _
        // Predicated region
        $region49: #{tpu_custom_call.1} parent=11 // pred_check
          %p520 = pneg %p284
        $region50: #{tpu_custom_call.1} parent=11 // pred_check_branch
          %522 = sbr.rel (%p520) target = $region52
        $region51: #{tpu_custom_call.1} parent=11 // pred_region
          %s524 = ssub.s32 16, 16
          %525 = vsyncadd [#allocation18], %s524
          %s527 = sshll.u32 [#allocation19], 4
          %s528 = int_to_ptr.vmem [resolvable:$true] %s527
          %530 = dma.hbm_to_vmem [thread:$0]  %s10, 16, %s528, [#allocation18]
        $region52: #{tpu_custom_call.1} parent=11 // pred_fallthru
          _
        // Predicated region
        $region53: #{tpu_custom_call.1} parent=11 // pred_check
          %p531 = pneg %p305
        $region54: #{tpu_custom_call.1} parent=11 // pred_check_branch
          %533 = sbr.rel (%p531) target = $region56
        $region55: #{tpu_custom_call.1} parent=11 // pred_region
          %s535 = ssub.s32 256, 256
          %536 = vsyncadd [#allocation21], %s535
          %s537 = sshll.u32 [#allocation20], 4
          %s538 = int_to_ptr.vmem [resolvable:$true] %s537
          %543 = dma.hbm_to_vmem [thread:$0]  %s11, 256, %s538, [#allocation21], 64, 64, 4
        $region56: #{tpu_custom_call.1} parent=11 // pred_fallthru
          _
        // Predicated region
        $region57: #{tpu_custom_call.1} parent=11 // pred_check
          %p544 = pneg %p326
        $region58: #{tpu_custom_call.1} parent=11 // pred_check_branch
          %546 = sbr.rel (%p544) target = $region60
        $region59: #{tpu_custom_call.1} parent=11 // pred_region
          %s548 = ssub.s32 16, 16
          %549 = vsyncadd [#allocation21], %s548
          %s551 = sshll.u32 [#allocation22], 4
          %s552 = int_to_ptr.vmem [resolvable:$true] %s551
          %554 = dma.hbm_to_vmem [thread:$0]  %s12, 16, %s552, [#allocation21]
        $region60: #{tpu_custom_call.1} parent=11 // pred_fallthru
          _
        // Predicated region
        $region61: #{tpu_custom_call.1} parent=11 // pred_check
          %p555 = pneg %p347
        $region62: #{tpu_custom_call.1} parent=11 // pred_check_branch
          %557 = sbr.rel (%p555) target = $region64
        $region63: #{tpu_custom_call.1} parent=11 // pred_region
          %s559 = ssub.s32 1024, 1024
          %560 = vsyncadd [#allocation24], %s559
          %s561 = sshll.u32 [#allocation23], 4
          %s562 = int_to_ptr.vmem [resolvable:$true] %s561
          %567 = dma.hbm_to_vmem [thread:$0]  %s13, 1024, %s562, [#allocation24], 64, 64, 4
        $region64: #{tpu_custom_call.1} parent=11 // pred_fallthru
          _
        // Predicated region
        $region65: #{tpu_custom_call.1} parent=11 // pred_check
          %p568 = pneg %p368
        $region66: #{tpu_custom_call.1} parent=11 // pred_check_branch
          %570 = sbr.rel (%p568) target = $region68
        $region67: #{tpu_custom_call.1} parent=11 // pred_region
          %s572 = ssub.s32 16, 16
          %573 = vsyncadd [#allocation24], %s572
          %s575 = sshll.u32 [#allocation25], 4
          %s576 = int_to_ptr.vmem [resolvable:$true] %s575
          %578 = dma.hbm_to_vmem [thread:$0]  %s14, 16, %s576, [#allocation24]
        $region68: #{tpu_custom_call.1} parent=11 // pred_fallthru
          _
      $region12: #{tpu_custom_call.1} parent=5 // pred_fallthru
        _
      %p579 = scmp.lt.s32.totalorder %s34, 2
      // Predicated region
      $region69: #{tpu_custom_call.1} parent=5 // pred_check
        %p580 = pneg %p579
      $region70: #{tpu_custom_call.1} parent=5 // pred_check_branch
        %582 = sbr.rel (%p580) target = $region72
      $region71: #{tpu_custom_call.1} parent=5 // pred_region
        // Predicated region
        $region73: #{tpu_custom_call.1} parent=71 // pred_check
          %p583 = pneg %p68
        $region74: #{tpu_custom_call.1} parent=71 // pred_check_branch
          %585 = sbr.rel (%p583) target = $region76
        $region75: #{tpu_custom_call.1} parent=71 // pred_region
          %s586 = sand.u32 %s58, 1
          %s587 = scalar_lea.sflag [#allocation3], %s586
          %s588 = sand.u32 %s58, 1
          %s589 = smul.addr %s588, 16
          %s590 = scalar_lea.vmem [#allocation2], %s589
          %s592 = ssub.s32 256, 256
          %593 = vsyncadd %s587, %s592
          %s594 = smul.addr %s42, 4
          %s595 = smul.addr %s41, 4
          %s596 = sadd.s32 %s594, %s595
          %s597 = smul.addr %s596, 64
          %s598 = scalar_lea.hbm %s0, %s597
          %s599 = sshll.u32 %s590, 4
          %s600 = int_to_ptr.vmem [resolvable:$true] %s599
          %605 = dma.hbm_to_vmem [thread:$0]  %s598, 256, %s600, %s587, 64, 64, 4
        $region76: #{tpu_custom_call.1} parent=71 // pred_fallthru
          _
      $region72: #{tpu_custom_call.1} parent=5 // pred_fallthru
        _
      %p606 = scmp.le.s32.totalorder 1, %s34
      %p607 = scmp.lt.s32.totalorder %s34, 3
      %p608 = pnand %p606, %p607
      %p609 = pneg %p608
      // Predicated region
      $region77: #{tpu_custom_call.1} parent=5 // pred_check
        _
      $region78: #{tpu_custom_call.1} parent=5 // pred_check_branch
        %611 = sbr.rel (%p608) target = $region80
      $region79: #{tpu_custom_call.1} parent=5 // pred_region
        %s612 = ssub.s32 %s34, 1
        %s613 = sand.u32 %s61, 1
        %s614 = scalar_lea.sflag [#allocation3], %s613
        %s615 = sand.u32 %s61, 1
        %s616 = smul.addr %s615, 16
        %s617 = scalar_lea.vmem [#allocation2], %s616
        // Predicated region
        $region81: #{tpu_custom_call.1} parent=79 // pred_check
          %p618 = pneg %p74
        $region82: #{tpu_custom_call.1} parent=79 // pred_check_branch
          %620 = sbr.rel (%p618) target = $region84
        $region83: #{tpu_custom_call.1} parent=79 // pred_region
          %621 = dma.done %s614, 256
        $region84: #{tpu_custom_call.1} parent=79 // pred_fallthru
          _
        // Predicated region
        $region85: #{tpu_custom_call.1} parent=79 // pred_check
          %p622 = pneg %p95
        $region86: #{tpu_custom_call.1} parent=79 // pred_check_branch
          %624 = sbr.rel (%p622) target = $region88
        $region87: #{tpu_custom_call.1} parent=79 // pred_region
          %625 = dma.done [#allocation6], 256
        $region88: #{tpu_custom_call.1} parent=79 // pred_fallthru
          _
        // Predicated region
        $region89: #{tpu_custom_call.1} parent=79 // pred_check
          %p626 = pneg %p116
        $region90: #{tpu_custom_call.1} parent=79 // pred_check_branch
          %628 = sbr.rel (%p626) target = $region92
        $region91: #{tpu_custom_call.1} parent=79 // pred_region
          %629 = dma.done [#allocation6], 16
        $region92: #{tpu_custom_call.1} parent=79 // pred_fallthru
          _
        // Predicated region
        $region93: #{tpu_custom_call.1} parent=79 // pred_check
          %p630 = pneg %p137
        $region94: #{tpu_custom_call.1} parent=79 // pred_check_branch
          %632 = sbr.rel (%p630) target = $region96
        $region95: #{tpu_custom_call.1} parent=79 // pred_region
          %633 = dma.done [#allocation9], 768
        $region96: #{tpu_custom_call.1} parent=79 // pred_fallthru
          _
        // Predicated region
        $region97: #{tpu_custom_call.1} parent=79 // pred_check
          %p634 = pneg %p158
        $region98: #{tpu_custom_call.1} parent=79 // pred_check_branch
          %636 = sbr.rel (%p634) target = $region100
        $region99: #{tpu_custom_call.1} parent=79 // pred_region
          %637 = dma.done [#allocation9], 16
        $region100: #{tpu_custom_call.1} parent=79 // pred_fallthru
          _
        // Predicated region
        $region101: #{tpu_custom_call.1} parent=79 // pred_check
          %p638 = pneg %p179
        $region102: #{tpu_custom_call.1} parent=79 // pred_check_branch
          %640 = sbr.rel (%p638) target = $region104
        $region103: #{tpu_custom_call.1} parent=79 // pred_region
          %641 = dma.done [#allocation12], 256
        $region104: #{tpu_custom_call.1} parent=79 // pred_fallthru
          _
        // Predicated region
        $region105: #{tpu_custom_call.1} parent=79 // pred_check
          %p642 = pneg %p200
        $region106: #{tpu_custom_call.1} parent=79 // pred_check_branch
          %644 = sbr.rel (%p642) target = $region108
        $region107: #{tpu_custom_call.1} parent=79 // pred_region
          %645 = dma.done [#allocation12], 16
        $region108: #{tpu_custom_call.1} parent=79 // pred_fallthru
          _
        // Predicated region
        $region109: #{tpu_custom_call.1} parent=79 // pred_check
          %p646 = pneg %p221
        $region110: #{tpu_custom_call.1} parent=79 // pred_check_branch
          %648 = sbr.rel (%p646) target = $region112
        $region111: #{tpu_custom_call.1} parent=79 // pred_region
          %649 = dma.done [#allocation15], 768
        $region112: #{tpu_custom_call.1} parent=79 // pred_fallthru
          _
        // Predicated region
        $region113: #{tpu_custom_call.1} parent=79 // pred_check
          %p650 = pneg %p242
        $region114: #{tpu_custom_call.1} parent=79 // pred_check_branch
          %652 = sbr.rel (%p650) target = $region116
        $region115: #{tpu_custom_call.1} parent=79 // pred_region
          %653 = dma.done [#allocation15], 16
        $region116: #{tpu_custom_call.1} parent=79 // pred_fallthru
          _
        // Predicated region
        $region117: #{tpu_custom_call.1} parent=79 // pred_check
          %p654 = pneg %p263
        $region118: #{tpu_custom_call.1} parent=79 // pred_check_branch
          %656 = sbr.rel (%p654) target = $region120
        $region119: #{tpu_custom_call.1} parent=79 // pred_region
          %657 = dma.done [#allocation18], 256
        $region120: #{tpu_custom_call.1} parent=79 // pred_fallthru
          _
        // Predicated region
        $region121: #{tpu_custom_call.1} parent=79 // pred_check
          %p658 = pneg %p284
        $region122: #{tpu_custom_call.1} parent=79 // pred_check_branch
          %660 = sbr.rel (%p658) target = $region124
        $region123: #{tpu_custom_call.1} parent=79 // pred_region
          %661 = dma.done [#allocation18], 16
        $region124: #{tpu_custom_call.1} parent=79 // pred_fallthru
          _
        // Predicated region
        $region125: #{tpu_custom_call.1} parent=79 // pred_check
          %p662 = pneg %p305
        $region126: #{tpu_custom_call.1} parent=79 // pred_check_branch
          %664 = sbr.rel (%p662) target = $region128
        $region127: #{tpu_custom_call.1} parent=79 // pred_region
          %665 = dma.done [#allocation21], 256
        $region128: #{tpu_custom_call.1} parent=79 // pred_fallthru
          _
        // Predicated region
        $region129: #{tpu_custom_call.1} parent=79 // pred_check
          %p666 = pneg %p326
        $region130: #{tpu_custom_call.1} parent=79 // pred_check_branch
          %668 = sbr.rel (%p666) target = $region132
        $region131: #{tpu_custom_call.1} parent=79 // pred_region
          %669 = dma.done [#allocation21], 16
        $region132: #{tpu_custom_call.1} parent=79 // pred_fallthru
          _
        // Predicated region
        $region133: #{tpu_custom_call.1} parent=79 // pred_check
          %p670 = pneg %p347
        $region134: #{tpu_custom_call.1} parent=79 // pred_check_branch
          %672 = sbr.rel (%p670) target = $region136
        $region135: #{tpu_custom_call.1} parent=79 // pred_region
          %673 = dma.done [#allocation24], 1024
        $region136: #{tpu_custom_call.1} parent=79 // pred_fallthru
          _
        // Predicated region
        $region137: #{tpu_custom_call.1} parent=79 // pred_check
          %p674 = pneg %p368
        $region138: #{tpu_custom_call.1} parent=79 // pred_check_branch
          %676 = sbr.rel (%p674) target = $region140
        $region139: #{tpu_custom_call.1} parent=79 // pred_region
          %677 = dma.done [#allocation24], 16
        $region140: #{tpu_custom_call.1} parent=79 // pred_fallthru
          _
        %s678 = sand.u32 %s61, 1
        %s679 = scalar_lea.sflag [#allocation3], %s678
        %s680 = sand.u32 %s61, 1
        %s681 = smul.addr %s680, 16
        %s682 = scalar_lea.vmem [#allocation2], %s681
        %p683 = pneg %p74
        %p684 = pneg %p71
        %p685 = pneg %p95
        %p686 = pneg %p92
        %p687 = pneg %p116
        %p688 = pneg %p113
        %p689 = pneg %p137
        %p690 = pneg %p134
        %p691 = pneg %p158
        %p692 = pneg %p155
        %p693 = pneg %p179
        %p694 = pneg %p176
        %p695 = pneg %p200
        %p696 = pneg %p197
        %p697 = pneg %p221
        %p698 = pneg %p218
        %p699 = pneg %p242
        %p700 = pneg %p239
        %p701 = pneg %p263
        %p702 = pneg %p260
        %p703 = pneg %p284
        %p704 = pneg %p281
        %p705 = pneg %p305
        %p706 = pneg %p302
        %p707 = pneg %p326
        %p708 = pneg %p323
        %p709 = pneg %p347
        %p710 = pneg %p344
        %p711 = pneg %p368
        %p712 = pneg %p365
        %p713 = pneg %p396
        %p714 = pneg %p393
        %s715 = sand.u32 %s383, 1
        %s716 = scalar_lea.sflag [#allocation4], %s715
        %s717 = sand.u32 %s383, 1
        %s718 = smul.addr %s717, 16
        %s719 = scalar_lea.vmem [#allocation26], %s718
        %v721 = vld [vmem:[%s617] sm:$0xf]
        %v722 = vld [vmem:[%s617 + $0x4] sm:$0xf]
        %v723 = vld [vmem:[%s617 + $0x8] sm:$0xf]
        %v724 = vld [vmem:[%s617 + $0xc] sm:$0xf]
        %v725 = vld [vmem:[#allocation5] sm:$0xf]
        %v726 = vld [vmem:[#allocation5 + $0x4] sm:$0xf]
        %v727 = vld [vmem:[#allocation5 + $0x8] sm:$0xf]
        %v728 = vld [vmem:[#allocation5 + $0xc] sm:$0xf]
        %v729 = vld [vmem:[#allocation7] sm:$0x1]
        %v731 = vlaneseq
        %v732 = vshrl.u32 %v731, 7
        %v733 = vsub.s32 0, %v732
        %v734 = vrot.slane %v729, %v733
        %v740 = vunpack.c.l.b16 %v721
        %v741 = vunpack.c.l.b16 %v722
        %v742 = vunpack.c.l.b16 %v723
        %v743 = vunpack.c.l.b16 %v724
        %v744 = vpack.c.b16 %v741, %v740
        %v745 = vpack.c.b16 %v743, %v742
        %v750 = vunpack.c.l.b16 %v725
        %v751 = vunpack.c.l.b16 %v726
        %v752 = vunpack.c.l.b16 %v727
        %v753 = vunpack.c.l.b16 %v728
        %v754 = vpack.c.b16 %v751, %v750
        %v755 = vpack.c.b16 %v753, %v752
        %vm758 = vcmask 261120
        %v760 = vsel %vm758, %v744, 0
        %v763 = vsel %vm758, %v745, 0
        %765 = vmatprep.subr.bf16.mxu0 0
        %766 = vmatpush1.bf16.msra.mxu0 %v754
        %767 = vmatprep.subr.bf16.mxu0 0
        %768 = vmatpush1.bf16.msra.mxu0 %v755
        %769 = vmatprep.subr.bf16.mxu0 0
        %770 = vmatpush1.bf16.msra.mxu0 0
        %771 = vmatprep.subr.bf16.mxu0 0
        %772 = vmatpush1.bf16.msra.mxu0 0
        %773 = vmatprep.subr.bf16.mxu0 0
        %774 = vmatpush1.bf16.msra.mxu0 0
        %775 = vmatprep.subr.bf16.mxu0 0
        %776 = vmatpush1.bf16.msra.mxu0 0
        %777 = vmatprep.subr.bf16.mxu0 0
        %778 = vmatpush1.bf16.msra.mxu0 0
        %779 = vmatprep.subr.bf16.mxu0 0
        %780 = vmatpush1.bf16.msra.mxu0 0
        %781 = vmatprep.subr.bf16.mxu0 0
        %782 = vmatpush1.bf16.msra.mxu0 0
        %783 = vmatprep.subr.bf16.mxu0 0
        %784 = vmatpush1.bf16.msra.mxu0 0
        %785 = vmatprep.subr.bf16.mxu0 0
        %786 = vmatpush1.bf16.msra.mxu0 0
        %787 = vmatprep.subr.bf16.mxu0 0
        %788 = vmatpush1.bf16.msra.mxu0 0
        %789 = vmatprep.subr.bf16.mxu0 0
        %790 = vmatpush1.bf16.msra.mxu0 0
        %791 = vmatprep.subr.bf16.mxu0 0
        %792 = vmatpush1.bf16.msra.mxu0 0
        %793 = vmatprep.subr.bf16.mxu0 0
        %794 = vmatpush1.bf16.msra.mxu0 0
        %795 = vmatprep.subr.bf16.mxu0 0
        %796 = vmatpush1.bf16.msra.mxu0 0
        %797 = vmatprep.mubr.bf16.mxu0 0
        %798 = vmatmul.mubr.bf16.gmra.mrb[0].mxu0 %v760
        %v799 = vpop.f32.mrb[0].mxu0
        %v800 = vadd.f32 %v734, %v799
        %v801 = vpop.f32.mrb[0].mxu0
        %v802 = vpop.f32.mrb[0].mxu0
        %v803 = vadd.f32 %v734, %v802
        %v804 = vpop.f32.mrb[0].mxu0
        %805 = vmatprep.mubr.bf16.mxu0 0
        %806 = vmatmul.mubr.bf16.gmra.mrb[0].mxu0 %v763
        %v807 = vpop.f32.mrb[0].mxu0
        %v808 = vadd.f32 %v734, %v807
        %v809 = vpop.f32.mrb[0].mxu0
        %v810 = vpop.f32.mrb[0].mxu0
        %v811 = vadd.f32 %v734, %v810
        %v812 = vpop.f32.mrb[0].mxu0
        %813 = vdwg.mxu0
        %v814 = vlaneseq
        %v815 = vshrl.u32 %v814, 7
        %v816 = vadd.s32 %v815, 8
        %v817 = vadd.s32 %v815, 16
        %v818 = vadd.s32 %v815, 24
        %s819 = smul.u32 %s44, 16
        %s820 = ssub.s32 %s819, 8
        %v821 = vstv %s820
        %v822 = vadd.s32 %v821, %v815
        %v823 = vadd.s32 %v821, %v816
        %v824 = vadd.s32 %v821, %v817
        %v825 = vadd.s32 %v821, %v818
        %vm826 = vcmp.ge.s32.totalorder %v822, 0
        %vm827 = vcmp.ge.s32.totalorder %v823, 0
        %vm828 = vcmp.ge.s32.totalorder %v824, 0
        %vm829 = vcmp.ge.s32.totalorder %v825, 0
        %vm830 = vcmp.lt.s32.totalorder %v822, 16
        %vm831 = vcmp.lt.s32.totalorder %v823, 16
        %vm832 = vcmp.lt.s32.totalorder %v824, 16
        %vm833 = vcmp.lt.s32.totalorder %v825, 16
        %vm834 = vmand %vm826, %vm830
        %vm835 = vmand %vm827, %vm831
        %vm836 = vmand %vm828, %vm832
        %vm837 = vmand %vm829, %vm833
        %v838 = vmax.f32 %v800, 0.0
        %v839 = vmax.f32 %v803, 0.0
        %v840 = vmax.f32 %v808, 0.0
        %v841 = vmax.f32 %v811, 0.0
        %v842 = vsel %vm834, 1, 0
        %v843 = vsel %vm835, 1, 0
        %v844 = vsel %vm836, 1, 0
        %v845 = vsel %vm837, 1, 0
        %vm846 = vcmp.eq.s32.totalorder %v842, 1
        %vm847 = vcmp.eq.s32.totalorder %v843, 1
        %vm848 = vcmp.eq.s32.totalorder %v844, 1
        %vm849 = vcmp.eq.s32.totalorder %v845, 1
        %v850 = vsel %vm846, %v838, 0.0
        %v851 = vsel %vm847, %v839, 0.0
        %v852 = vsel %vm848, %v840, 0.0
        %v853 = vsel %vm849, %v841, 0.0
        %v854 = vrot.slane %v850, 7
        %v855 = vrot.slane %v851, 7
        %v856 = vrot.slane %v852, 7
        %v857 = vrot.slane %v853, 7
        %vm858 = vcmp.lt.s32.totalorder %v815, 1
        %v859 = vsel %vm858, %v856, %v857
        %v860 = vsel %vm858, %v855, %v856
        %v861 = vsel %vm858, %v854, %v855
        %v862 = vsel %vm858, %v857, %v854
        %v863 = vrot.slane %v850, 1
        %v864 = vrot.slane %v851, 1
        %v865 = vrot.slane %v852, 1
        %v866 = vrot.slane %v853, 1
        %vm867 = vcmp.lt.s32.totalorder %v815, 7
        %v868 = vsel %vm867, %v865, %v866
        %v869 = vsel %vm867, %v864, %v865
        %v870 = vsel %vm867, %v863, %v864
        %v871 = vsel %vm867, %v866, %v863
        %v872 = vpack.c.bf16 %v861, %v862
        %v873 = vpack.c.bf16 %v859, %v860
        %v874 = vld [vmem:[#allocation8] sm:$0xf]
        %v875 = vld [vmem:[#allocation8 + $0x4] sm:$0xf]
        %v876 = vld [vmem:[#allocation8 + $0x8] sm:$0xf]
        %v877 = vld [vmem:[#allocation8 + $0xc] sm:$0xf]
        %v878 = vpack.c.bf16 %v851, %v850
        %v879 = vpack.c.bf16 %v853, %v852
        %s880 = scalar_lea.vmem [#allocation8], 16
        %v881 = vld [vmem:[%s880] sm:$0xf]
        %v882 = vld [vmem:[%s880 + $0x4] sm:$0xf]
        %v883 = vld [vmem:[%s880 + $0x8] sm:$0xf]
        %v884 = vld [vmem:[%s880 + $0xc] sm:$0xf]
        %v889 = vunpack.c.l.b16 %v881
        %v890 = vunpack.c.l.b16 %v882
        %v891 = vunpack.c.l.b16 %v883
        %v892 = vunpack.c.l.b16 %v884
        %v893 = vpack.c.b16 %v890, %v889
        %v894 = vpack.c.b16 %v892, %v891
        %v898 = vsel %vm758, %v878, 0
        %v901 = vsel %vm758, %v879, 0
        %903 = vmatprep.subr.bf16.mxu0 0
        %904 = vmatpush1.bf16.msra.mxu0 %v893
        %905 = vmatprep.subr.bf16.mxu0 0
        %906 = vmatpush1.bf16.msra.mxu0 %v894
        %907 = vmatprep.subr.bf16.mxu0 0
        %908 = vmatpush1.bf16.msra.mxu0 0
        %909 = vmatprep.subr.bf16.mxu0 0
        %910 = vmatpush1.bf16.msra.mxu0 0
        %911 = vmatprep.subr.bf16.mxu0 0
        %912 = vmatpush1.bf16.msra.mxu0 0
        %913 = vmatprep.subr.bf16.mxu0 0
        %914 = vmatpush1.bf16.msra.mxu0 0
        %915 = vmatprep.subr.bf16.mxu0 0
        %916 = vmatpush1.bf16.msra.mxu0 0
        %917 = vmatprep.subr.bf16.mxu0 0
        %918 = vmatpush1.bf16.msra.mxu0 0
        %919 = vmatprep.subr.bf16.mxu0 0
        %920 = vmatpush1.bf16.msra.mxu0 0
        %921 = vmatprep.subr.bf16.mxu0 0
        %922 = vmatpush1.bf16.msra.mxu0 0
        %923 = vmatprep.subr.bf16.mxu0 0
        %924 = vmatpush1.bf16.msra.mxu0 0
        %925 = vmatprep.subr.bf16.mxu0 0
        %926 = vmatpush1.bf16.msra.mxu0 0
        %927 = vmatprep.subr.bf16.mxu0 0
        %928 = vmatpush1.bf16.msra.mxu0 0
        %929 = vmatprep.subr.bf16.mxu0 0
        %930 = vmatpush1.bf16.msra.mxu0 0
        %931 = vmatprep.subr.bf16.mxu0 0
        %932 = vmatpush1.bf16.msra.mxu0 0
        %933 = vmatprep.subr.bf16.mxu0 0
        %934 = vmatpush1.bf16.msra.mxu0 0
        %935 = vmatprep.mubr.bf16.mxu0 0
        %936 = vmatmul.mubr.bf16.gmra.mrb[0].mxu0 %v898
        %v937 = vpop.f32.mrb[0].mxu0
        %v938 = vadd.f32 0.0, %v937
        %v939 = vpop.f32.mrb[0].mxu0
        %v940 = vpop.f32.mrb[0].mxu0
        %v941 = vadd.f32 0.0, %v940
        %v942 = vpop.f32.mrb[0].mxu0
        %943 = vmatprep.mubr.bf16.mxu0 0
        %944 = vmatmul.mubr.bf16.gmra.mrb[0].mxu0 %v901
        %v945 = vpop.f32.mrb[0].mxu0
        %v946 = vadd.f32 0.0, %v945
        %v947 = vpop.f32.mrb[0].mxu0
        %v948 = vpop.f32.mrb[0].mxu0
        %v949 = vadd.f32 0.0, %v948
        %v950 = vpop.f32.mrb[0].mxu0
        %951 = vdwg.mxu0
        %v956 = vunpack.c.l.b16 %v874
        %v957 = vunpack.c.l.b16 %v875
        %v958 = vunpack.c.l.b16 %v876
        %v959 = vunpack.c.l.b16 %v877
        %v960 = vpack.c.b16 %v957, %v956
        %v961 = vpack.c.b16 %v959, %v958
        %v965 = vsel %vm758, %v872, 0
        %v968 = vsel %vm758, %v873, 0
        %970 = vmatprep.subr.bf16.mxu0 0
        %971 = vmatpush1.bf16.msra.mxu0 %v960
        %972 = vmatprep.subr.bf16.mxu0 0
        %973 = vmatpush1.bf16.msra.mxu0 %v961
        %974 = vmatprep.subr.bf16.mxu0 0
        %975 = vmatpush1.bf16.msra.mxu0 0
        %976 = vmatprep.subr.bf16.mxu0 0
        %977 = vmatpush1.bf16.msra.mxu0 0
        %978 = vmatprep.subr.bf16.mxu0 0
        %979 = vmatpush1.bf16.msra.mxu0 0
        %980 = vmatprep.subr.bf16.mxu0 0
        %981 = vmatpush1.bf16.msra.mxu0 0
        %982 = vmatprep.subr.bf16.mxu0 0
        %983 = vmatpush1.bf16.msra.mxu0 0
        %984 = vmatprep.subr.bf16.mxu0 0
        %985 = vmatpush1.bf16.msra.mxu0 0
        %986 = vmatprep.subr.bf16.mxu0 0
        %987 = vmatpush1.bf16.msra.mxu0 0
        %988 = vmatprep.subr.bf16.mxu0 0
        %989 = vmatpush1.bf16.msra.mxu0 0
        %990 = vmatprep.subr.bf16.mxu0 0
        %991 = vmatpush1.bf16.msra.mxu0 0
        %992 = vmatprep.subr.bf16.mxu0 0
        %993 = vmatpush1.bf16.msra.mxu0 0
        %994 = vmatprep.subr.bf16.mxu0 0
        %995 = vmatpush1.bf16.msra.mxu0 0
        %996 = vmatprep.subr.bf16.mxu0 0
        %997 = vmatpush1.bf16.msra.mxu0 0
        %998 = vmatprep.subr.bf16.mxu0 0
        %999 = vmatpush1.bf16.msra.mxu0 0
        %1000 = vmatprep.subr.bf16.mxu0 0
        %1001 = vmatpush1.bf16.msra.mxu0 0
        %1002 = vmatprep.mubr.bf16.mxu0 0
        %1003 = vmatmul.mubr.bf16.gmra.mrb[0].mxu0 %v965
        %v1004 = vpop.f32.mrb[0].mxu0
        %v1005 = vadd.f32 %v938, %v1004
        %v1006 = vpop.f32.mrb[0].mxu0
        %v1007 = vpop.f32.mrb[0].mxu0
        %v1008 = vadd.f32 %v941, %v1007
        %v1009 = vpop.f32.mrb[0].mxu0
        %1010 = vmatprep.mubr.bf16.mxu0 0
        %1011 = vmatmul.mubr.bf16.gmra.mrb[0].mxu0 %v968
        %v1012 = vpop.f32.mrb[0].mxu0
        %v1013 = vadd.f32 %v946, %v1012
        %v1014 = vpop.f32.mrb[0].mxu0
        %v1015 = vpop.f32.mrb[0].mxu0
        %v1016 = vadd.f32 %v949, %v1015
        %v1017 = vpop.f32.mrb[0].mxu0
        %1018 = vdwg.mxu0
        %v1019 = vpack.c.bf16 %v869, %v870
        %v1020 = vpack.c.bf16 %v871, %v868
        %s1021 = scalar_lea.vmem [#allocation8], 32
        %v1022 = vld [vmem:[%s1021] sm:$0xf]
        %v1023 = vld [vmem:[%s1021 + $0x4] sm:$0xf]
        %v1024 = vld [vmem:[%s1021 + $0x8] sm:$0xf]
        %v1025 = vld [vmem:[%s1021 + $0xc] sm:$0xf]
        %v1030 = vunpack.c.l.b16 %v1022
        %v1031 = vunpack.c.l.b16 %v1023
        %v1032 = vunpack.c.l.b16 %v1024
        %v1033 = vunpack.c.l.b16 %v1025
        %v1034 = vpack.c.b16 %v1031, %v1030
        %v1035 = vpack.c.b16 %v1033, %v1032
        %v1039 = vsel %vm758, %v1019, 0
        %v1042 = vsel %vm758, %v1020, 0
        %1044 = vmatprep.subr.bf16.mxu0 0
        %1045 = vmatpush1.bf16.msra.mxu0 %v1034
        %1046 = vmatprep.subr.bf16.mxu0 0
        %1047 = vmatpush1.bf16.msra.mxu0 %v1035
        %1048 = vmatprep.subr.bf16.mxu0 0
        %1049 = vmatpush1.bf16.msra.mxu0 0
        %1050 = vmatprep.subr.bf16.mxu0 0
        %1051 = vmatpush1.bf16.msra.mxu0 0
        %1052 = vmatprep.subr.bf16.mxu0 0
        %1053 = vmatpush1.bf16.msra.mxu0 0
        %1054 = vmatprep.subr.bf16.mxu0 0
        %1055 = vmatpush1.bf16.msra.mxu0 0
        %1056 = vmatprep.subr.bf16.mxu0 0
        %1057 = vmatpush1.bf16.msra.mxu0 0
        %1058 = vmatprep.subr.bf16.mxu0 0
        %1059 = vmatpush1.bf16.msra.mxu0 0
        %1060 = vmatprep.subr.bf16.mxu0 0
        %1061 = vmatpush1.bf16.msra.mxu0 0
        %1062 = vmatprep.subr.bf16.mxu0 0
        %1063 = vmatpush1.bf16.msra.mxu0 0
        %1064 = vmatprep.subr.bf16.mxu0 0
        %1065 = vmatpush1.bf16.msra.mxu0 0
        %1066 = vmatprep.subr.bf16.mxu0 0
        %1067 = vmatpush1.bf16.msra.mxu0 0
        %1068 = vmatprep.subr.bf16.mxu0 0
        %1069 = vmatpush1.bf16.msra.mxu0 0
        %1070 = vmatprep.subr.bf16.mxu0 0
        %1071 = vmatpush1.bf16.msra.mxu0 0
        %1072 = vmatprep.subr.bf16.mxu0 0
        %1073 = vmatpush1.bf16.msra.mxu0 0
        %1074 = vmatprep.subr.bf16.mxu0 0
        %1075 = vmatpush1.bf16.msra.mxu0 0
        %1076 = vmatprep.mubr.bf16.mxu0 0
        %1077 = vmatmul.mubr.bf16.gmra.mrb[0].mxu0 %v1039
        %v1078 = vpop.f32.mrb[0].mxu0
        %v1079 = vadd.f32 0.0, %v1078
        %v1080 = vpop.f32.mrb[0].mxu0
        %v1081 = vpop.f32.mrb[0].mxu0
        %v1082 = vadd.f32 0.0, %v1081
        %v1083 = vpop.f32.mrb[0].mxu0
        %1084 = vmatprep.mubr.bf16.mxu0 0
        %1085 = vmatmul.mubr.bf16.gmra.mrb[0].mxu0 %v1042
        %v1086 = vpop.f32.mrb[0].mxu0
        %v1087 = vadd.f32 0.0, %v1086
        %v1088 = vpop.f32.mrb[0].mxu0
        %v1089 = vpop.f32.mrb[0].mxu0
        %v1090 = vadd.f32 0.0, %v1089
        %v1091 = vpop.f32.mrb[0].mxu0
        %1092 = vdwg.mxu0
        %v1093 = vadd.f32 %v1005, %v1079
        %v1094 = vadd.f32 %v1008, %v1082
        %v1095 = vadd.f32 %v1013, %v1087
        %v1096 = vadd.f32 %v1016, %v1090
        %v1097 = vld [vmem:[#allocation10] sm:$0x1]
        %v1099 = vlaneseq
        %v1100 = vshrl.u32 %v1099, 7
        %v1101 = vsub.s32 0, %v1100
        %v1102 = vrot.slane %v1097, %v1101
        %v1104 = vadd.f32 %v1093, %v1102
        %v1105 = vadd.f32 %v1094, %v1102
        %v1106 = vadd.f32 %v1095, %v1102
        %v1107 = vadd.f32 %v1096, %v1102
        %v1108 = vmax.f32 %v1104, 0.0
        %v1109 = vmax.f32 %v1105, 0.0
        %v1110 = vmax.f32 %v1106, 0.0
        %v1111 = vmax.f32 %v1107, 0.0
        %v1112 = vpack.c.bf16 %v1109, %v1108
        %v1113 = vpack.c.bf16 %v1111, %v1110
        %v1114 = vld [vmem:[#allocation11] sm:$0xf]
        %v1115 = vld [vmem:[#allocation11 + $0x4] sm:$0xf]
        %v1116 = vld [vmem:[#allocation11 + $0x8] sm:$0xf]
        %v1117 = vld [vmem:[#allocation11 + $0xc] sm:$0xf]
        %v1118 = vld [vmem:[#allocation13] sm:$0x1]
        %v1120 = vlaneseq
        %v1121 = vshrl.u32 %v1120, 7
        %v1122 = vsub.s32 0, %v1121
        %v1123 = vrot.slane %v1118, %v1122
        %v1129 = vunpack.c.l.b16 %v1114
        %v1130 = vunpack.c.l.b16 %v1115
        %v1131 = vunpack.c.l.b16 %v1116
        %v1132 = vunpack.c.l.b16 %v1117
        %v1133 = vpack.c.b16 %v1130, %v1129
        %v1134 = vpack.c.b16 %v1132, %v1131
        %v1138 = vsel %vm758, %v1112, 0
        %v1141 = vsel %vm758, %v1113, 0
        %1143 = vmatprep.subr.bf16.mxu0 0
        %1144 = vmatpush1.bf16.msra.mxu0 %v1133
        %1145 = vmatprep.subr.bf16.mxu0 0
        %1146 = vmatpush1.bf16.msra.mxu0 %v1134
        %1147 = vmatprep.subr.bf16.mxu0 0
        %1148 = vmatpush1.bf16.msra.mxu0 0
        %1149 = vmatprep.subr.bf16.mxu0 0
        %1150 = vmatpush1.bf16.msra.mxu0 0
        %1151 = vmatprep.subr.bf16.mxu0 0
        %1152 = vmatpush1.bf16.msra.mxu0 0
        %1153 = vmatprep.subr.bf16.mxu0 0
        %1154 = vmatpush1.bf16.msra.mxu0 0
        %1155 = vmatprep.subr.bf16.mxu0 0
        %1156 = vmatpush1.bf16.msra.mxu0 0
        %1157 = vmatprep.subr.bf16.mxu0 0
        %1158 = vmatpush1.bf16.msra.mxu0 0
        %1159 = vmatprep.subr.bf16.mxu0 0
        %1160 = vmatpush1.bf16.msra.mxu0 0
        %1161 = vmatprep.subr.bf16.mxu0 0
        %1162 = vmatpush1.bf16.msra.mxu0 0
        %1163 = vmatprep.subr.bf16.mxu0 0
        %1164 = vmatpush1.bf16.msra.mxu0 0
        %1165 = vmatprep.subr.bf16.mxu0 0
        %1166 = vmatpush1.bf16.msra.mxu0 0
        %1167 = vmatprep.subr.bf16.mxu0 0
        %1168 = vmatpush1.bf16.msra.mxu0 0
        %1169 = vmatprep.subr.bf16.mxu0 0
        %1170 = vmatpush1.bf16.msra.mxu0 0
        %1171 = vmatprep.subr.bf16.mxu0 0
        %1172 = vmatpush1.bf16.msra.mxu0 0
        %1173 = vmatprep.subr.bf16.mxu0 0
        %1174 = vmatpush1.bf16.msra.mxu0 0
        %1175 = vmatprep.mubr.bf16.mxu0 0
        %1176 = vmatmul.mubr.bf16.gmra.mrb[0].mxu0 %v1138
        %v1177 = vpop.f32.mrb[0].mxu0
        %v1178 = vadd.f32 %v1123, %v1177
        %v1179 = vpop.f32.mrb[0].mxu0
        %v1180 = vpop.f32.mrb[0].mxu0
        %v1181 = vadd.f32 %v1123, %v1180
        %v1182 = vpop.f32.mrb[0].mxu0
        %1183 = vmatprep.mubr.bf16.mxu0 0
        %1184 = vmatmul.mubr.bf16.gmra.mrb[0].mxu0 %v1141
        %v1185 = vpop.f32.mrb[0].mxu0
        %v1186 = vadd.f32 %v1123, %v1185
        %v1187 = vpop.f32.mrb[0].mxu0
        %v1188 = vpop.f32.mrb[0].mxu0
        %v1189 = vadd.f32 %v1123, %v1188
        %v1190 = vpop.f32.mrb[0].mxu0
        %1191 = vdwg.mxu0
        %v1192 = vadd.f32 %v800, %v1178
        %v1193 = vadd.f32 %v803, %v1181
        %v1194 = vadd.f32 %v808, %v1186
        %v1195 = vadd.f32 %v811, %v1189
        %v1196 = vmax.f32 %v1192, 0.0
        %v1197 = vmax.f32 %v1193, 0.0
        %v1198 = vmax.f32 %v1194, 0.0
        %v1199 = vmax.f32 %v1195, 0.0
        %v1200 = vsel %vm846, %v1196, 0.0
        %v1201 = vsel %vm847, %v1197, 0.0
        %v1202 = vsel %vm848, %v1198, 0.0
        %v1203 = vsel %vm849, %v1199, 0.0
        %v1204 = vrot.slane %v1200, 7
        %v1205 = vrot.slane %v1201, 7
        %v1206 = vrot.slane %v1202, 7
        %v1207 = vrot.slane %v1203, 7
        %v1208 = vsel %vm858, %v1206, %v1207
        %v1209 = vsel %vm858, %v1205, %v1206
        %v1210 = vsel %vm858, %v1204, %v1205
        %v1211 = vsel %vm858, %v1207, %v1204
        %v1212 = vrot.slane %v1200, 1
        %v1213 = vrot.slane %v1201, 1
        %v1214 = vrot.slane %v1202, 1
        %v1215 = vrot.slane %v1203, 1
        %v1216 = vsel %vm867, %v1214, %v1215
        %v1217 = vsel %vm867, %v1213, %v1214
        %v1218 = vsel %vm867, %v1212, %v1213
        %v1219 = vsel %vm867, %v1215, %v1212
        %v1220 = vpack.c.bf16 %v1210, %v1211
        %v1221 = vpack.c.bf16 %v1208, %v1209
        %v1222 = vld [vmem:[#allocation14] sm:$0xf]
        %v1223 = vld [vmem:[#allocation14 + $0x4] sm:$0xf]
        %v1224 = vld [vmem:[#allocation14 + $0x8] sm:$0xf]
        %v1225 = vld [vmem:[#allocation14 + $0xc] sm:$0xf]
        %v1226 = vpack.c.bf16 %v1201, %v1200
        %v1227 = vpack.c.bf16 %v1203, %v1202
        %s1228 = scalar_lea.vmem [#allocation14], 16
        %v1229 = vld [vmem:[%s1228] sm:$0xf]
        %v1230 = vld [vmem:[%s1228 + $0x4] sm:$0xf]
        %v1231 = vld [vmem:[%s1228 + $0x8] sm:$0xf]
        %v1232 = vld [vmem:[%s1228 + $0xc] sm:$0xf]
        %v1237 = vunpack.c.l.b16 %v1229
        %v1238 = vunpack.c.l.b16 %v1230
        %v1239 = vunpack.c.l.b16 %v1231
        %v1240 = vunpack.c.l.b16 %v1232
        %v1241 = vpack.c.b16 %v1238, %v1237
        %v1242 = vpack.c.b16 %v1240, %v1239
        %v1246 = vsel %vm758, %v1226, 0
        %v1249 = vsel %vm758, %v1227, 0
        %1251 = vmatprep.subr.bf16.mxu0 0
        %1252 = vmatpush1.bf16.msra.mxu0 %v1241
        %1253 = vmatprep.subr.bf16.mxu0 0
        %1254 = vmatpush1.bf16.msra.mxu0 %v1242
        %1255 = vmatprep.subr.bf16.mxu0 0
        %1256 = vmatpush1.bf16.msra.mxu0 0
        %1257 = vmatprep.subr.bf16.mxu0 0
        %1258 = vmatpush1.bf16.msra.mxu0 0
        %1259 = vmatprep.subr.bf16.mxu0 0
        %1260 = vmatpush1.bf16.msra.mxu0 0
        %1261 = vmatprep.subr.bf16.mxu0 0
        %1262 = vmatpush1.bf16.msra.mxu0 0
        %1263 = vmatprep.subr.bf16.mxu0 0
        %1264 = vmatpush1.bf16.msra.mxu0 0
        %1265 = vmatprep.subr.bf16.mxu0 0
        %1266 = vmatpush1.bf16.msra.mxu0 0
        %1267 = vmatprep.subr.bf16.mxu0 0
        %1268 = vmatpush1.bf16.msra.mxu0 0
        %1269 = vmatprep.subr.bf16.mxu0 0
        %1270 = vmatpush1.bf16.msra.mxu0 0
        %1271 = vmatprep.subr.bf16.mxu0 0
        %1272 = vmatpush1.bf16.msra.mxu0 0
        %1273 = vmatprep.subr.bf16.mxu0 0
        %1274 = vmatpush1.bf16.msra.mxu0 0
        %1275 = vmatprep.subr.bf16.mxu0 0
        %1276 = vmatpush1.bf16.msra.mxu0 0
        %1277 = vmatprep.subr.bf16.mxu0 0
        %1278 = vmatpush1.bf16.msra.mxu0 0
        %1279 = vmatprep.subr.bf16.mxu0 0
        %1280 = vmatpush1.bf16.msra.mxu0 0
        %1281 = vmatprep.subr.bf16.mxu0 0
        %1282 = vmatpush1.bf16.msra.mxu0 0
        %1283 = vmatprep.mubr.bf16.mxu0 0
        %1284 = vmatmul.mubr.bf16.gmra.mrb[0].mxu0 %v1246
        %v1285 = vpop.f32.mrb[0].mxu0
        %v1286 = vadd.f32 0.0, %v1285
        %v1287 = vpop.f32.mrb[0].mxu0
        %v1288 = vpop.f32.mrb[0].mxu0
        %v1289 = vadd.f32 0.0, %v1288
        %v1290 = vpop.f32.mrb[0].mxu0
        %1291 = vmatprep.mubr.bf16.mxu0 0
        %1292 = vmatmul.mubr.bf16.gmra.mrb[0].mxu0 %v1249
        %v1293 = vpop.f32.mrb[0].mxu0
        %v1294 = vadd.f32 0.0, %v1293
        %v1295 = vpop.f32.mrb[0].mxu0
        %v1296 = vpop.f32.mrb[0].mxu0
        %v1297 = vadd.f32 0.0, %v1296
        %v1298 = vpop.f32.mrb[0].mxu0
        %1299 = vdwg.mxu0
        %v1304 = vunpack.c.l.b16 %v1222
        %v1305 = vunpack.c.l.b16 %v1223
        %v1306 = vunpack.c.l.b16 %v1224
        %v1307 = vunpack.c.l.b16 %v1225
        %v1308 = vpack.c.b16 %v1305, %v1304
        %v1309 = vpack.c.b16 %v1307, %v1306
        %v1313 = vsel %vm758, %v1220, 0
        %v1316 = vsel %vm758, %v1221, 0
        %1318 = vmatprep.subr.bf16.mxu0 0
        %1319 = vmatpush1.bf16.msra.mxu0 %v1308
        %1320 = vmatprep.subr.bf16.mxu0 0
        %1321 = vmatpush1.bf16.msra.mxu0 %v1309
        %1322 = vmatprep.subr.bf16.mxu0 0
        %1323 = vmatpush1.bf16.msra.mxu0 0
        %1324 = vmatprep.subr.bf16.mxu0 0
        %1325 = vmatpush1.bf16.msra.mxu0 0
        %1326 = vmatprep.subr.bf16.mxu0 0
        %1327 = vmatpush1.bf16.msra.mxu0 0
        %1328 = vmatprep.subr.bf16.mxu0 0
        %1329 = vmatpush1.bf16.msra.mxu0 0
        %1330 = vmatprep.subr.bf16.mxu0 0
        %1331 = vmatpush1.bf16.msra.mxu0 0
        %1332 = vmatprep.subr.bf16.mxu0 0
        %1333 = vmatpush1.bf16.msra.mxu0 0
        %1334 = vmatprep.subr.bf16.mxu0 0
        %1335 = vmatpush1.bf16.msra.mxu0 0
        %1336 = vmatprep.subr.bf16.mxu0 0
        %1337 = vmatpush1.bf16.msra.mxu0 0
        %1338 = vmatprep.subr.bf16.mxu0 0
        %1339 = vmatpush1.bf16.msra.mxu0 0
        %1340 = vmatprep.subr.bf16.mxu0 0
        %1341 = vmatpush1.bf16.msra.mxu0 0
        %1342 = vmatprep.subr.bf16.mxu0 0
        %1343 = vmatpush1.bf16.msra.mxu0 0
        %1344 = vmatprep.subr.bf16.mxu0 0
        %1345 = vmatpush1.bf16.msra.mxu0 0
        %1346 = vmatprep.subr.bf16.mxu0 0
        %1347 = vmatpush1.bf16.msra.mxu0 0
        %1348 = vmatprep.subr.bf16.mxu0 0
        %1349 = vmatpush1.bf16.msra.mxu0 0
        %1350 = vmatprep.mubr.bf16.mxu0 0
        %1351 = vmatmul.mubr.bf16.gmra.mrb[0].mxu0 %v1313
        %v1352 = vpop.f32.mrb[0].mxu0
        %v1353 = vadd.f32 %v1286, %v1352
        %v1354 = vpop.f32.mrb[0].mxu0
        %v1355 = vpop.f32.mrb[0].mxu0
        %v1356 = vadd.f32 %v1289, %v1355
        %v1357 = vpop.f32.mrb[0].mxu0
        %1358 = vmatprep.mubr.bf16.mxu0 0
        %1359 = vmatmul.mubr.bf16.gmra.mrb[0].mxu0 %v1316
        %v1360 = vpop.f32.mrb[0].mxu0
        %v1361 = vadd.f32 %v1294, %v1360
        %v1362 = vpop.f32.mrb[0].mxu0
        %v1363 = vpop.f32.mrb[0].mxu0
        %v1364 = vadd.f32 %v1297, %v1363
        %v1365 = vpop.f32.mrb[0].mxu0
        %1366 = vdwg.mxu0
        %v1367 = vpack.c.bf16 %v1217, %v1218
        %v1368 = vpack.c.bf16 %v1219, %v1216
        %s1369 = scalar_lea.vmem [#allocation14], 32
        %v1370 = vld [vmem:[%s1369] sm:$0xf]
        %v1371 = vld [vmem:[%s1369 + $0x4] sm:$0xf]
        %v1372 = vld [vmem:[%s1369 + $0x8] sm:$0xf]
        %v1373 = vld [vmem:[%s1369 + $0xc] sm:$0xf]
        %v1378 = vunpack.c.l.b16 %v1370
        %v1379 = vunpack.c.l.b16 %v1371
        %v1380 = vunpack.c.l.b16 %v1372
        %v1381 = vunpack.c.l.b16 %v1373
        %v1382 = vpack.c.b16 %v1379, %v1378
        %v1383 = vpack.c.b16 %v1381, %v1380
        %v1387 = vsel %vm758, %v1367, 0
        %v1390 = vsel %vm758, %v1368, 0
        %1392 = vmatprep.subr.bf16.mxu0 0
        %1393 = vmatpush1.bf16.msra.mxu0 %v1382
        %1394 = vmatprep.subr.bf16.mxu0 0
        %1395 = vmatpush1.bf16.msra.mxu0 %v1383
        %1396 = vmatprep.subr.bf16.mxu0 0
        %1397 = vmatpush1.bf16.msra.mxu0 0
        %1398 = vmatprep.subr.bf16.mxu0 0
        %1399 = vmatpush1.bf16.msra.mxu0 0
        %1400 = vmatprep.subr.bf16.mxu0 0
        %1401 = vmatpush1.bf16.msra.mxu0 0
        %1402 = vmatprep.subr.bf16.mxu0 0
        %1403 = vmatpush1.bf16.msra.mxu0 0
        %1404 = vmatprep.subr.bf16.mxu0 0
        %1405 = vmatpush1.bf16.msra.mxu0 0
        %1406 = vmatprep.subr.bf16.mxu0 0
        %1407 = vmatpush1.bf16.msra.mxu0 0
        %1408 = vmatprep.subr.bf16.mxu0 0
        %1409 = vmatpush1.bf16.msra.mxu0 0
        %1410 = vmatprep.subr.bf16.mxu0 0
        %1411 = vmatpush1.bf16.msra.mxu0 0
        %1412 = vmatprep.subr.bf16.mxu0 0
        %1413 = vmatpush1.bf16.msra.mxu0 0
        %1414 = vmatprep.subr.bf16.mxu0 0
        %1415 = vmatpush1.bf16.msra.mxu0 0
        %1416 = vmatprep.subr.bf16.mxu0 0
        %1417 = vmatpush1.bf16.msra.mxu0 0
        %1418 = vmatprep.subr.bf16.mxu0 0
        %1419 = vmatpush1.bf16.msra.mxu0 0
        %1420 = vmatprep.subr.bf16.mxu0 0
        %1421 = vmatpush1.bf16.msra.mxu0 0
        %1422 = vmatprep.subr.bf16.mxu0 0
        %1423 = vmatpush1.bf16.msra.mxu0 0
        %1424 = vmatprep.mubr.bf16.mxu0 0
        %1425 = vmatmul.mubr.bf16.gmra.mrb[0].mxu0 %v1387
        %v1426 = vpop.f32.mrb[0].mxu0
        %v1427 = vadd.f32 0.0, %v1426
        %v1428 = vpop.f32.mrb[0].mxu0
        %v1429 = vpop.f32.mrb[0].mxu0
        %v1430 = vadd.f32 0.0, %v1429
        %v1431 = vpop.f32.mrb[0].mxu0
        %1432 = vmatprep.mubr.bf16.mxu0 0
        %1433 = vmatmul.mubr.bf16.gmra.mrb[0].mxu0 %v1390
        %v1434 = vpop.f32.mrb[0].mxu0
        %v1435 = vadd.f32 0.0, %v1434
        %v1436 = vpop.f32.mrb[0].mxu0
        %v1437 = vpop.f32.mrb[0].mxu0
        %v1438 = vadd.f32 0.0, %v1437
        %v1439 = vpop.f32.mrb[0].mxu0
        %1440 = vdwg.mxu0
        %v1441 = vadd.f32 %v1353, %v1427
        %v1442 = vadd.f32 %v1356, %v1430
        %v1443 = vadd.f32 %v1361, %v1435
        %v1444 = vadd.f32 %v1364, %v1438
        %v1445 = vld [vmem:[#allocation16] sm:$0x1]
        %v1447 = vlaneseq
        %v1448 = vshrl.u32 %v1447, 7
        %v1449 = vsub.s32 0, %v1448
        %v1450 = vrot.slane %v1445, %v1449
        %v1452 = vadd.f32 %v1441, %v1450
        %v1453 = vadd.f32 %v1442, %v1450
        %v1454 = vadd.f32 %v1443, %v1450
        %v1455 = vadd.f32 %v1444, %v1450
        %v1456 = vmax.f32 %v1452, 0.0
        %v1457 = vmax.f32 %v1453, 0.0
        %v1458 = vmax.f32 %v1454, 0.0
        %v1459 = vmax.f32 %v1455, 0.0
        %v1460 = vpack.c.bf16 %v1457, %v1456
        %v1461 = vpack.c.bf16 %v1459, %v1458
        %v1462 = vld [vmem:[#allocation17] sm:$0xf]
        %v1463 = vld [vmem:[#allocation17 + $0x4] sm:$0xf]
        %v1464 = vld [vmem:[#allocation17 + $0x8] sm:$0xf]
        %v1465 = vld [vmem:[#allocation17 + $0xc] sm:$0xf]
        %v1466 = vld [vmem:[#allocation19] sm:$0x1]
        %v1468 = vlaneseq
        %v1469 = vshrl.u32 %v1468, 7
        %v1470 = vsub.s32 0, %v1469
        %v1471 = vrot.slane %v1466, %v1470
        %v1477 = vunpack.c.l.b16 %v1462
        %v1478 = vunpack.c.l.b16 %v1463
        %v1479 = vunpack.c.l.b16 %v1464
        %v1480 = vunpack.c.l.b16 %v1465
        %v1481 = vpack.c.b16 %v1478, %v1477
        %v1482 = vpack.c.b16 %v1480, %v1479
        %v1486 = vsel %vm758, %v1460, 0
        %v1489 = vsel %vm758, %v1461, 0
        %1491 = vmatprep.subr.bf16.mxu0 0
        %1492 = vmatpush1.bf16.msra.mxu0 %v1481
        %1493 = vmatprep.subr.bf16.mxu0 0
        %1494 = vmatpush1.bf16.msra.mxu0 %v1482
        %1495 = vmatprep.subr.bf16.mxu0 0
        %1496 = vmatpush1.bf16.msra.mxu0 0
        %1497 = vmatprep.subr.bf16.mxu0 0
        %1498 = vmatpush1.bf16.msra.mxu0 0
        %1499 = vmatprep.subr.bf16.mxu0 0
        %1500 = vmatpush1.bf16.msra.mxu0 0
        %1501 = vmatprep.subr.bf16.mxu0 0
        %1502 = vmatpush1.bf16.msra.mxu0 0
        %1503 = vmatprep.subr.bf16.mxu0 0
        %1504 = vmatpush1.bf16.msra.mxu0 0
        %1505 = vmatprep.subr.bf16.mxu0 0
        %1506 = vmatpush1.bf16.msra.mxu0 0
        %1507 = vmatprep.subr.bf16.mxu0 0
        %1508 = vmatpush1.bf16.msra.mxu0 0
        %1509 = vmatprep.subr.bf16.mxu0 0
        %1510 = vmatpush1.bf16.msra.mxu0 0
        %1511 = vmatprep.subr.bf16.mxu0 0
        %1512 = vmatpush1.bf16.msra.mxu0 0
        %1513 = vmatprep.subr.bf16.mxu0 0
        %1514 = vmatpush1.bf16.msra.mxu0 0
        %1515 = vmatprep.subr.bf16.mxu0 0
        %1516 = vmatpush1.bf16.msra.mxu0 0
        %1517 = vmatprep.subr.bf16.mxu0 0
        %1518 = vmatpush1.bf16.msra.mxu0 0
        %1519 = vmatprep.subr.bf16.mxu0 0
        %1520 = vmatpush1.bf16.msra.mxu0 0
        %1521 = vmatprep.subr.bf16.mxu0 0
        %1522 = vmatpush1.bf16.msra.mxu0 0
        %1523 = vmatprep.mubr.bf16.mxu0 0
        %1524 = vmatmul.mubr.bf16.gmra.mrb[0].mxu0 %v1486
        %v1525 = vpop.f32.mrb[0].mxu0
        %v1526 = vpop.f32.mrb[0].mxu0
        %v1527 = vpop.f32.mrb[0].mxu0
        %v1528 = vadd.f32 %v1471, %v1527
        %v1529 = vpop.f32.mrb[0].mxu0
        %1530 = vmatprep.mubr.bf16.mxu0 0
        %1531 = vmatmul.mubr.bf16.gmra.mrb[0].mxu0 %v1489
        %v1532 = vpop.f32.mrb[0].mxu0
        %v1533 = vadd.f32 %v1471, %v1532
        %v1534 = vpop.f32.mrb[0].mxu0
        %v1535 = vpop.f32.mrb[0].mxu0
        %v1536 = vpop.f32.mrb[0].mxu0
        %1537 = vdwg.mxu0
        %v1538 = vadd.f32 %v1193, %v1528
        %v1539 = vadd.f32 %v1194, %v1533
        %v1540 = vpack.c.bf16 %v1539, %v1538
        %v1541 = vld [vmem:[#allocation20] sm:$0xf]
        %v1542 = vld [vmem:[#allocation20 + $0x4] sm:$0xf]
        %v1543 = vld [vmem:[#allocation20 + $0x8] sm:$0xf]
        %v1544 = vld [vmem:[#allocation20 + $0xc] sm:$0xf]
        %v1545 = vld [vmem:[#allocation22] sm:$0x1]
        %v1547 = vlaneseq
        %v1548 = vshrl.u32 %v1547, 7
        %v1549 = vsub.s32 0, %v1548
        %v1550 = vrot.slane %v1545, %v1549
        %v1556 = vunpack.c.l.b16 %v1541
        %v1557 = vunpack.c.l.b16 %v1542
        %v1558 = vunpack.c.l.b16 %v1543
        %v1559 = vunpack.c.l.b16 %v1544
        %v1560 = vpack.c.b16 %v1557, %v1556
        %v1561 = vpack.c.b16 %v1559, %v1558
        %v1565 = vsel %vm758, %v1540, 0
        %1567 = vmatprep.subr.bf16.mxu0 0
        %1568 = vmatpush1.bf16.msra.mxu0 %v1560
        %1569 = vmatprep.subr.bf16.mxu0 0
        %1570 = vmatpush1.bf16.msra.mxu0 %v1561
        %1571 = vmatprep.subr.bf16.mxu0 0
        %1572 = vmatpush1.bf16.msra.mxu0 0
        %1573 = vmatprep.subr.bf16.mxu0 0
        %1574 = vmatpush1.bf16.msra.mxu0 0
        %1575 = vmatprep.subr.bf16.mxu0 0
        %1576 = vmatpush1.bf16.msra.mxu0 0
        %1577 = vmatprep.subr.bf16.mxu0 0
        %1578 = vmatpush1.bf16.msra.mxu0 0
        %1579 = vmatprep.subr.bf16.mxu0 0
        %1580 = vmatpush1.bf16.msra.mxu0 0
        %1581 = vmatprep.subr.bf16.mxu0 0
        %1582 = vmatpush1.bf16.msra.mxu0 0
        %1583 = vmatprep.subr.bf16.mxu0 0
        %1584 = vmatpush1.bf16.msra.mxu0 0
        %1585 = vmatprep.subr.bf16.mxu0 0
        %1586 = vmatpush1.bf16.msra.mxu0 0
        %1587 = vmatprep.subr.bf16.mxu0 0
        %1588 = vmatpush1.bf16.msra.mxu0 0
        %1589 = vmatprep.subr.bf16.mxu0 0
        %1590 = vmatpush1.bf16.msra.mxu0 0
        %1591 = vmatprep.subr.bf16.mxu0 0
        %1592 = vmatpush1.bf16.msra.mxu0 0
        %1593 = vmatprep.subr.bf16.mxu0 0
        %1594 = vmatpush1.bf16.msra.mxu0 0
        %1595 = vmatprep.subr.bf16.mxu0 0
        %1596 = vmatpush1.bf16.msra.mxu0 0
        %1597 = vmatprep.subr.bf16.mxu0 0
        %1598 = vmatpush1.bf16.msra.mxu0 0
        %1599 = vmatprep.mubr.bf16.mxu0 0
        %1600 = vmatmul.mubr.bf16.gmra.mrb[0].mxu0 %v1565
        %v1601 = vpop.f32.mrb[0].mxu0
        %v1602 = vadd.f32 %v1550, %v1601
        %v1603 = vpop.f32.mrb[0].mxu0
        %v1604 = vpop.f32.mrb[0].mxu0
        %v1605 = vadd.f32 %v1550, %v1604
        %v1606 = vpop.f32.mrb[0].mxu0
        %1607 = vdwg.mxu0
        %v1608 = vmax.f32 %v1602, 0.0
        %v1609 = vmax.f32 %v1605, 0.0
        %v1610 = vpack.c.bf16 %v1609, %v1608
        %v1611 = vld [vmem:[#allocation23] sm:$0xf]
        %v1612 = vld [vmem:[#allocation23 + $0x4] sm:$0xf]
        %v1613 = vld [vmem:[#allocation23 + $0x8] sm:$0xf]
        %v1614 = vld [vmem:[#allocation23 + $0xc] sm:$0xf]
        %v1615 = vld [vmem:[#allocation23 + $0x10] sm:$0xf]
        %v1616 = vld [vmem:[#allocation23 + $0x14] sm:$0xf]
        %v1617 = vld [vmem:[#allocation23 + $0x18] sm:$0xf]
        %v1618 = vld [vmem:[#allocation23 + $0x1c] sm:$0xf]
        %v1619 = vld [vmem:[#allocation23 + $0x20] sm:$0xf]
        %v1620 = vld [vmem:[#allocation23 + $0x24] sm:$0xf]
        %v1621 = vld [vmem:[#allocation23 + $0x28] sm:$0xf]
        %v1622 = vld [vmem:[#allocation23 + $0x2c] sm:$0xf]
        %v1623 = vld [vmem:[#allocation23 + $0x30] sm:$0xf]
        %v1624 = vld [vmem:[#allocation23 + $0x34] sm:$0xf]
        %v1625 = vld [vmem:[#allocation23 + $0x38] sm:$0xf]
        %v1626 = vld [vmem:[#allocation23 + $0x3c] sm:$0xf]
        %v1627 = vld [vmem:[#allocation25] sm:$0x1]
        %v1629 = vlaneseq
        %v1630 = vshrl.u32 %v1629, 7
        %v1631 = vsub.s32 0, %v1630
        %v1632 = vrot.slane %v1627, %v1631
        %v1650 = vunpack.c.l.b16 %v1611
        %v1651 = vunpack.c.l.b16 %v1612
        %v1652 = vunpack.c.l.b16 %v1613
        %v1653 = vunpack.c.l.b16 %v1614
        %v1654 = vunpack.c.l.b16 %v1615
        %v1655 = vunpack.c.l.b16 %v1616
        %v1656 = vunpack.c.l.b16 %v1617
        %v1657 = vunpack.c.l.b16 %v1618
        %v1658 = vunpack.c.l.b16 %v1619
        %v1659 = vunpack.c.l.b16 %v1620
        %v1660 = vunpack.c.l.b16 %v1621
        %v1661 = vunpack.c.l.b16 %v1622
        %v1662 = vunpack.c.l.b16 %v1623
        %v1663 = vunpack.c.l.b16 %v1624
        %v1664 = vunpack.c.l.b16 %v1625
        %v1665 = vunpack.c.l.b16 %v1626
        %v1666 = vpack.c.b16 %v1651, %v1650
        %v1667 = vpack.c.b16 %v1653, %v1652
        %v1668 = vpack.c.b16 %v1655, %v1654
        %v1669 = vpack.c.b16 %v1657, %v1656
        %v1670 = vpack.c.b16 %v1659, %v1658
        %v1671 = vpack.c.b16 %v1661, %v1660
        %v1672 = vpack.c.b16 %v1663, %v1662
        %v1673 = vpack.c.b16 %v1665, %v1664
        %1682 = vmatprep.subr.bf16.mxu0 0
        %1683 = vmatpush1.bf16.msra.mxu0 %v1666
        %1684 = vmatprep.subr.bf16.mxu0 0
        %1685 = vmatpush1.bf16.msra.mxu0 %v1667
        %1686 = vmatprep.subr.bf16.mxu0 0
        %1687 = vmatpush1.bf16.msra.mxu0 %v1668
        %1688 = vmatprep.subr.bf16.mxu0 0
        %1689 = vmatpush1.bf16.msra.mxu0 %v1669
        %1690 = vmatprep.subr.bf16.mxu0 0
        %1691 = vmatpush1.bf16.msra.mxu0 %v1670
        %1692 = vmatprep.subr.bf16.mxu0 0
        %1693 = vmatpush1.bf16.msra.mxu0 %v1671
        %1694 = vmatprep.subr.bf16.mxu0 0
        %1695 = vmatpush1.bf16.msra.mxu0 %v1672
        %1696 = vmatprep.subr.bf16.mxu0 0
        %1697 = vmatpush1.bf16.msra.mxu0 %v1673
        %1698 = vmatprep.subr.bf16.mxu0 0
        %1699 = vmatpush1.bf16.msra.mxu0 0
        %1700 = vmatprep.subr.bf16.mxu0 0
        %1701 = vmatpush1.bf16.msra.mxu0 0
        %1702 = vmatprep.subr.bf16.mxu0 0
        %1703 = vmatpush1.bf16.msra.mxu0 0
        %1704 = vmatprep.subr.bf16.mxu0 0
        %1705 = vmatpush1.bf16.msra.mxu0 0
        %1706 = vmatprep.subr.bf16.mxu0 0
        %1707 = vmatpush1.bf16.msra.mxu0 0
        %1708 = vmatprep.subr.bf16.mxu0 0
        %1709 = vmatpush1.bf16.msra.mxu0 0
        %1710 = vmatprep.subr.bf16.mxu0 0
        %1711 = vmatpush1.bf16.msra.mxu0 0
        %1712 = vmatprep.subr.bf16.mxu0 0
        %1713 = vmatpush1.bf16.msra.mxu0 0
        %1714 = vmatprep.mubr.bf16.mxu0 0
        %1715 = vmatmul.mubr.bf16.gmra.mrb[0].mxu0 %v1610
        %v1716 = vpop.f32.mrb[0].mxu0
        %v1717 = vadd.f32 %v1632, %v1716
        %v1718 = vpop.f32.mrb[0].mxu0
        %v1719 = vpop.f32.mrb[0].mxu0
        %v1720 = vadd.f32 %v1632, %v1719
        %v1721 = vpop.f32.mrb[0].mxu0
        %1722 = vdwg.mxu0
        %1723 = vst [vmem:[%s719] sm:$0xff] %v1717
        %1724 = vst [vmem:[%s719 + $0x8] sm:$0xff] %v1720
        %s1725 = sand.u32 %s383, 1
        %s1726 = scalar_lea.sflag [#allocation4], %s1725
        %s1727 = sand.u32 %s383, 1
        %s1728 = smul.addr %s1727, 16
        %s1729 = scalar_lea.vmem [#allocation26], %s1728
        // Predicated region
        $region141: #{tpu_custom_call.1} parent=79 // pred_check
          %p1730 = pneg %p393
        $region142: #{tpu_custom_call.1} parent=79 // pred_check_branch
          %1732 = sbr.rel (%p1730) target = $region144
        $region143: #{tpu_custom_call.1} parent=79 // pred_region
          %s1734 = ssub.s32 256, 256
          %1735 = vsyncadd %s1726, %s1734
          %s1736 = smul.addr %s44, 2
          %s1737 = smul.addr %s43, 2
          %s1738 = sadd.s32 %s1736, %s1737
          %s1739 = smul.addr %s1738, 128
          %s1740 = scalar_lea.hbm %s15, %s1739
          %s1741 = sshll.u32 %s1729, 4
          %s1742 = int_to_ptr.vmem [resolvable:$true] %s1741
          %1747 = dma.vmem_to_hbm [thread:$0]  %s1742, 256, %s1740, %s1726, 128, 128, 8
        $region144: #{tpu_custom_call.1} parent=79 // pred_fallthru
          _
      $region80: #{tpu_custom_call.1} parent=5 // pred_fallthru
        _
      %p1748 = scmp.le.s32.totalorder 2, %s34
      // Predicated region
      $region145: #{tpu_custom_call.1} parent=5 // pred_check
        %p1749 = pneg %p1748
      $region146: #{tpu_custom_call.1} parent=5 // pred_check_branch
        %1751 = sbr.rel (%p1749) target = $region148
      $region147: #{tpu_custom_call.1} parent=5 // pred_region
        %s1752 = ssub.s32 %s34, 2
        // Predicated region
        $region149: #{tpu_custom_call.1} parent=147 // pred_check
          %p1753 = pneg %p399
        $region150: #{tpu_custom_call.1} parent=147 // pred_check_branch
          %1755 = sbr.rel (%p1753) target = $region152
        $region151: #{tpu_custom_call.1} parent=147 // pred_region
          %s1756 = sand.u32 %s384, 1
          %s1757 = scalar_lea.sflag [#allocation4], %s1756
          %s1758 = sand.u32 %s384, 1
          %s1759 = smul.addr %s1758, 16
          %s1760 = scalar_lea.vmem [#allocation26], %s1759
          %1761 = dma.done %s1757, 256
        $region152: #{tpu_custom_call.1} parent=147 // pred_fallthru
          _
      $region148: #{tpu_custom_call.1} parent=5 // pred_fallthru
        _
    $region6: #{tpu_custom_call.1} parent=1 // loop_footer
      %s38 = sadd.s32 1, %s34
    $region7: #{tpu_custom_call.1} parent=1 // loop_footer_branch
      %33 = sbr.rel target = $region3
    $region8: #{tpu_custom_call.1} parent=1 // loop_exit
      _
    %1762 = vsyncpa [#allocation3], 1
    %s1763 = scalar_lea.sflag [#allocation3], 1
    %1764 = vsyncpa %s1763, 1
    %1765 = vsyncpa [#allocation6], 1
    %1766 = vsyncpa [#allocation9], 1
    %1767 = vsyncpa [#allocation12], 1
    %1768 = vsyncpa [#allocation15], 1
    %1769 = vsyncpa [#allocation18], 1
    %1770 = vsyncpa [#allocation21], 1
    %1771 = vsyncpa [#allocation24], 1
    %1772 = vsyncpa [#allocation4], 1
    %s1773 = scalar_lea.sflag [#allocation4], 1
    %1774 = vsyncpa %s1773, 1

</llo_original>
